<compile_context>
chip_gen: v7x
topology: tpu7x:2x2x1
jax: 0.10.0
libtpu: 0.0.40
codegen_flags: <defaults>
</compile_context>

<pallas_src>
import functools
import math

import numpy as np
import jax
import jax.numpy as jnp
from jax import lax
from jax.experimental import pallas as pl
from jax.experimental.pallas import tpu as pltpu

ENCODED_DIM = 4
EPS = 1e-5  # nn.BatchNorm2d default


def _vmem_specs(n):
    return [pl.BlockSpec(memory_space=pltpu.MemorySpace.VMEM) for _ in range(n)]


# ------------------------------ fused kernel --------------------------------
def decoder_kernel(x_ref, w1_ref, w2_ref, b2_ref, sk1_ref, sk2_ref, sk3_ref,
                   g_ref, t_ref, tt_ref, vec_ref, o_ref, *, batch):
    f32 = jnp.float32

    def dot(a, b):
        return jnp.dot(a, b, preferred_element_type=f32)

    vec = vec_ref[...]                                   # (6, 128) packed small params

    # -------- decoder_lin: Linear(E,128)+ReLU, Linear(128,288)+ReLU ----------
    h1 = jnp.maximum(dot(x_ref[...], w1_ref[...]) + vec[0:1, :], 0.0)          # (B, 128)
    # Linear-2 columns pre-ordered (ih, iw, ic), each ih block padded to 128 lanes.
    h2 = jnp.maximum(dot(h1, w2_ref[...]) + b2_ref[...], 0.0)                  # (B, 384)
    # Unflatten: three vreg-aligned lane blocks -> rows ordered (ih, b).
    act = jnp.concatenate([h2[:, 0:128], h2[:, 128:256], h2[:, 256:384]],
                          axis=0)                                              # (3B, 128)

    # -------- ConvTranspose2d: 3 row-gathers (height scatter) + ONE wide dot -
    # a       : (R_in , 128)  activation, cols (iw, ic) lane-padded
    # sk[kh]  : (R_out, R_in) 0/1 height scatter (stride-2 zero insertion,
    #                         padding, output_padding)
    # g       : (3*128, 128)  PyTorch weights pre-folded with the width scatter,
    #                         kh-blocks stacked along K, cols (ow, oc) padded
    def convt(a, sk_ref, g):
        A = jnp.concatenate([dot(sk_ref[0], a), dot(sk_ref[1], a),
                             dot(sk_ref[2], a)], axis=1)                       # (R_out, 384)
        return dot(A, g)                                                       # (R_out, 128)

    # -------- BatchNorm2d (training-mode biased batch stats) + ReLU ----------
    # 2 matmuls: [sum(y); sum(y*y)] @ t  -> mean & E[y^2];  [a_c; b_c] @ tt
    # broadcasts per-channel scale/shift back to (ow, oc) lanes.
    # The ConvTranspose2d bias is skipped: train-mode BN cancels it exactly.
    def bn_relu(y, t, tt, gamma, beta, count):
        inv_n = 1.0 / count
        s = jnp.concatenate([jnp.sum(y, axis=0, keepdims=True),
                             jnp.sum(y * y, axis=0, keepdims=True)], axis=0)   # (2, 128)
        m = dot(s, t) * inv_n                                                  # (2, OC)
        mean = m[0:1, :]
        var = jnp.maximum(m[1:2, :] - mean * mean, 0.0)
        a_c = gamma * lax.rsqrt(var + EPS)                                     # (1, OC)
        b_c = beta - mean * a_c                                                # (1, OC)
        ab = dot(jnp.concatenate([a_c, b_c], axis=0), tt)                      # (2, 128)
        return jnp.maximum(y * ab[0:1, :] + ab[1:2, :], 0.0)

    y1 = bn_relu(convt(act, sk1_ref, g_ref[0]),
                 t_ref[:, 0:16], tt_ref[0:16, :],
                 vec[1:2, 0:16], vec[2:3, 0:16], float(batch * 7 * 7))         # (B*7 , 128)
    y2 = bn_relu(convt(y1, sk2_ref, g_ref[1]),
                 t_ref[:, 16:24], tt_ref[16:24, :],
                 vec[3:4, 0:8], vec[4:5, 0:8], float(batch * 14 * 14))         # (B*14, 128)
    y3 = convt(y2, sk3_ref, g_ref[2]) + vec[5:6, :]                            # (B*28, 128)
    o_ref[...] = 0.5 * (jnp.tanh(0.5 * y3) + 1.0)                              # stable sigmoid


# ---------------------- one-time parameter preparation ----------------------
def _build_g(w_pt, w_in, ow, pad):
    """Fold ConvTranspose2d weights (IC,OC,KH,KW) with the width scatter and
    stack the kh blocks along K (each block lane-padded to 128):
    g[kh*128 + iw*IC+ic, ow*OC+oc] = w_pt[ic, oc, kh, kw], kw = ow + pad - 2*iw."""
    ic, oc, khn, kwn = w_pt.shape
    g = np.zeros((khn * 128, 128), np.float32)
    for kh in range(khn):
        for iw in range(w_in):
            for o in range(ow):
                kw = o + pad - 2 * iw
                if 0 <= kw < kwn:
                    g[kh * 128 + iw * ic: kh * 128 + (iw + 1) * ic,
                      o * oc:(o + 1) * oc] = w_pt[:, :, kh, kw]
    return g


def _build_sk(batch, h_in, oh, pad, n_in_rows, in_row):
    """0/1 height-scatter: out row (b,oh) <- in row (b,ih) with ih=(oh+pad-kh)/2."""
    sk = np.zeros((3, batch * oh, n_in_rows), np.float32)
    for kh in range(3):
        for b in range(batch):
            for o in range(oh):
                num = o + pad - kh
                if num >= 0 and num % 2 == 0 and num // 2 < h_in:
                    sk[kh, b * oh + o, in_row(b, num // 2)] = 1.0
    return sk


def prepare_params(params, batch):
    """One-time (eager, numpy) preprocessing of the PyTorch-layout parameters."""
    p = {k: np.asarray(v, np.float32) for k, v in params.items()}
    out = {"w1": p["w1"]}

    # Linear-2 folded with Unflatten: PyTorch output order (ic, ih, iw) ->
    # (ih, iw, ic), each ih block lane-padded 96 -> 128.
    w2 = np.zeros((128, 3 * 128), np.float32)
    b2 = np.zeros((1, 3 * 128), np.float32)
    for ih in range(3):
        for iw in range(3):
            for ic in range(32):
                src = ic * 9 + ih * 3 + iw
                dst = ih * 128 + iw * 32 + ic
                w2[:, dst] = p["w2"][:, src]
                b2[0, dst] = p["b2"][src]
    out["w2"], out["b2"] = w2, b2

    # Stacked, lane-padded conv-transpose weights (one array for all 3 stages).
    out["g"] = np.stack([_build_g(p["wc1"], 3, 7, 0),     # 3x3  -> 7x7   (32->16)
                         _build_g(p["wc2"], 7, 14, 1),    # 7x7  -> 14x14 (16->8)
                         _build_g(p["wc3"], 14, 28, 1)])  # 14x14-> 28x28 (8->1)

    # Height-scatter gather matrices (stage-1 input rows are (ih, b)).
    out["sk1"] = _build_sk(batch, 3, 7, 0, 3 * batch, lambda b, ih: ih * batch + b)
    out["sk2"] = _build_sk(batch, 7, 14, 1, batch * 7, lambda b, ih: b * 7 + ih)
    out["sk3"] = _build_sk(batch, 14, 28, 1, batch * 14, lambda b, ih: b * 14 + ih)

    # Channel-tiling matrices for BN stats / broadcast (stages 1 & 2 packed).
    t = np.zeros((128, 24), np.float32)
    for ow in range(7):
        for oc in range(16):
            t[ow * 16 + oc, oc] = 1.0
    for ow in range(14):
        for oc in range(8):
            t[ow * 8 + oc, 16 + oc] = 1.0
    tt = np.zeros((24, 128), np.float32)
    tt[0:16, :] = t[:, 0:16].T
    tt[16:24, :] = t[:, 16:24].T
    out["t"], out["tt"] = t, tt

    # Small per-channel vectors packed into one (6,128) array:
    # [b1 | gamma1 | beta1 | gamma2 | beta2 | conv3-bias broadcast]
    vec = np.zeros((6, 128), np.float32)
    vec[0, :] = p["b1"]
    vec[1, :16] = p["g1"]
    vec[2, :16] = p["be1"]
    vec[3, :8] = p["g2"]
    vec[4, :8] = p["be2"]
    vec[5, :] = p["bc3"][0]
    out["vec"] = vec
    # bc1 / bc2 intentionally unused: train-mode BatchNorm2d cancels a
    # per-channel conv bias exactly, so skipping them is mathematically identical.
    return {k: jnp.asarray(v) for k, v in out.items()}


_ARG_ORDER = ("w1", "w2", "b2", "sk1", "sk2", "sk3", "g", "t", "tt", "vec")


# ------------------------------ full forward --------------------------------
def decoder_forward(x, prep):
    batch = x.shape[0]
    kern = functools.partial(decoder_kernel, batch=batch)
    out2d = pl.pallas_call(
        kern,
        out_shape=jax.ShapeDtypeStruct((batch * 28, 128), jnp.float32),
        in_specs=_vmem_specs(1 + len(_ARG_ORDER)),
        out_specs=pl.BlockSpec(memory_space=pltpu.MemorySpace.VMEM),
    )(x, *[prep[k] for k in _ARG_ORDER])
    # rows are (b, oh); strip the 128-lane padding and reshape to NCHW (free).
    return out2d[:, :28].reshape(batch, 1, 28, 28)


# --------------------------- pure-XLA reference -----------------------------
def reference_forward(x, p):
    """Dilate + flipped-kernel correlation reference (validation only)."""
    hp = lax.Precision.HIGHEST
    b = x.shape[0]
    h = jnp.maximum(jnp.dot(x, p["w1"], precision=hp) + p["b1"], 0.0)
    h = jnp.maximum(jnp.dot(h, p["w2"], precision=hp) + p["b2"], 0.0)
    h = h.reshape(b, 32, 3, 3)

    def convT(x_nchw, w_pt, bias, stride, padding, out_pad):
        kh = w_pt.shape[2]
        lo, hi = kh - 1 - padding, kh - 1 - padding + out_pad
        xp = lax.pad(jnp.transpose(x_nchw, (0, 2, 3, 1)), jnp.float32(0.0),
                     [(0, 0, 0), (lo, hi, stride - 1), (lo, hi, stride - 1), (0, 0, 0)])
        w_hwio = jnp.transpose(jnp.flip(w_pt, (2, 3)), (2, 3, 0, 1))
        y = lax.conv_general_dilated(xp, w_hwio, (1, 1), "VALID",
                                     dimension_numbers=("NHWC", "HWIO", "NHWC"),
                                     precision=hp)
        return jnp.transpose(y, (0, 3, 1, 2)) + bias.reshape(1, -1, 1, 1)

    def bn_relu(y, gamma, beta):
        mean = jnp.mean(y, axis=(0, 2, 3), keepdims=True)
        var = jnp.mean(jnp.square(y - mean), axis=(0, 2, 3), keepdims=True)
        yn = (y - mean) * lax.rsqrt(var + EPS)
        yn = yn * gamma.reshape(1, -1, 1, 1) + beta.reshape(1, -1, 1, 1)
        return jnp.maximum(yn, 0.0)

    h = bn_relu(convT(h, p["wc1"], p["bc1"], 2, 0, 0), p["g1"], p["be1"])
    h = bn_relu(convT(h, p["wc2"], p["bc2"], 2, 1, 1), p["g2"], p["be2"])
    h = convT(h, p["wc3"], p["bc3"], 2, 1, 1)
    return 1.0 / (1.0 + jnp.exp(-h))


# --------------------------------- params -----------------------------------
def init_params(key, encoded_dim):
    ks = jax.random.split(key, 10)

    def u(k, shape, fan_in):
        bnd = 1.0 / math.sqrt(fan_in)
        return jax.random.uniform(k, shape, jnp.float32, -bnd, bnd)

    p = {}
    # Linear weights stored already transposed: (in, out)
    p["w1"] = u(ks[0], (encoded_dim, 128), encoded_dim)
    p["b1"] = u(ks[1], (128,), encoded_dim)
    p["w2"] = u(ks[2], (128, 288), 128)
    p["b2"] = u(ks[3], (288,), 128)
    # ConvTranspose2d weights in PyTorch layout (in_ch, out_ch, kH, kW)
    p["wc1"] = u(ks[4], (32, 16, 3, 3), 32 * 9)
    p["bc1"] = u(ks[5], (16,), 32 * 9)
    p["wc2"] = u(ks[6], (16, 8, 3, 3), 16 * 9)
    p["bc2"] = u(ks[7], (8,), 16 * 9)
    p["wc3"] = u(ks[8], (8, 1, 3, 3), 8 * 9)
    p["bc3"] = u(ks[9], (1,), 8 * 9)
    # BatchNorm affine params (PyTorch default init: gamma=1, beta=0)
    p["g1"], p["be1"] = jnp.ones((16,), jnp.float32), jnp.zeros((16,), jnp.float32)
    p["g2"], p["be2"] = jnp.ones((8,), jnp.float32), jnp.zeros((8,), jnp.float32)
    return p


if __name__ == "__main__":
    key = jax.random.PRNGKey(0)
    kx, kp = jax.random.split(key)
    params = init_params(kp, ENCODED_DIM)
    x = jax.random.normal(kx, (2, ENCODED_DIM), jnp.float32)

    prep = prepare_params(params, batch=x.shape[0])
    fwd = jax.jit(decoder_forward)
    out = jax.block_until_ready(fwd(x, prep))

    assert out.shape == (2, 1, 28, 28), out.shape
    assert bool(jnp.all(jnp.isfinite(out)))
    assert bool(jnp.all((out >= 0.0) & (out <= 1.0)))  # sigmoid range

    ref = jax.block_until_ready(jax.jit(reference_forward)(x, params))
    max_err = float(jnp.max(jnp.abs(out - ref)))
    assert max_err < 2e-3, max_err

    print("KERNEL_OK")
</pallas_src>

<mosaic_0001>
module attributes {stable_mosaic.version = 11 : i64} {
  func.func @decoder_kernel(%arg0: memref<2x4xf32, #tpu.memory_space<vmem>>, %arg1: memref<4x128xf32, #tpu.memory_space<vmem>>, %arg2: memref<128x384xf32, #tpu.memory_space<vmem>>, %arg3: memref<1x384xf32, #tpu.memory_space<vmem>>, %arg4: memref<3x14x6xf32, #tpu.memory_space<vmem>>, %arg5: memref<3x28x14xf32, #tpu.memory_space<vmem>>, %arg6: memref<3x56x28xf32, #tpu.memory_space<vmem>>, %arg7: memref<3x384x128xf32, #tpu.memory_space<vmem>>, %arg8: memref<128x24xf32, #tpu.memory_space<vmem>>, %arg9: memref<24x128xf32, #tpu.memory_space<vmem>>, %arg10: memref<6x128xf32, #tpu.memory_space<vmem>>, %arg11: memref<56x128xf32, #tpu.memory_space<vmem>>) attributes {dimension_semantics = [], scalar_prefetch = 0 : i64, scratch_operands = 0 : i64, tpu.core_type = #tpu.core_type<tc>} {
    %c0 = arith.constant 0 : index
    %c0_0 = arith.constant 0 : index
    %0 = vector.load %arg10[%c0, %c0_0] : memref<6x128xf32, #tpu.memory_space<vmem>>, vector<6x128xf32>
    %c0_1 = arith.constant 0 : index
    %c0_2 = arith.constant 0 : index
    %1 = vector.load %arg0[%c0_1, %c0_2] : memref<2x4xf32, #tpu.memory_space<vmem>>, vector<2x4xf32>
    %c0_3 = arith.constant 0 : index
    %c0_4 = arith.constant 0 : index
    %2 = vector.load %arg1[%c0_3, %c0_4] : memref<4x128xf32, #tpu.memory_space<vmem>>, vector<4x128xf32>
    %cst = arith.constant dense<0.000000e+00> : vector<2x128xf32>
    %3 = tpu.matmul %1, %2, %cst {dimension_numbers = #tpu.dot_dimension_numbers<[1], [0], [0], [1], [0, 0, 1, 1], [], []>} : vector<2x4xf32>, vector<4x128xf32>, vector<2x128xf32> -> vector<2x128xf32>
    %4 = vector.extract_strided_slice %0 {offsets = [0, 0], sizes = [1, 128], strides = [1, 1]} : vector<6x128xf32> to vector<1x128xf32>
    %5 = vector.broadcast %4 : vector<1x128xf32> to vector<2x128xf32>
    %6 = arith.addf %3, %5 : vector<2x128xf32>
    %cst_5 = arith.constant 0.000000e+00 : f32
    %7 = vector.broadcast %cst_5 : f32 to vector<2x128xf32>
    %8 = arith.maximumf %6, %7 : vector<2x128xf32>
    %c0_6 = arith.constant 0 : index
    %c0_7 = arith.constant 0 : index
    %9 = vector.load %arg2[%c0_6, %c0_7] : memref<128x384xf32, #tpu.memory_space<vmem>>, vector<128x384xf32>
    %cst_8 = arith.constant dense<0.000000e+00> : vector<2x384xf32>
    %10 = tpu.matmul %8, %9, %cst_8 {dimension_numbers = #tpu.dot_dimension_numbers<[1], [0], [0], [1], [0, 0, 1, 1], [], []>} : vector<2x128xf32>, vector<128x384xf32>, vector<2x384xf32> -> vector<2x384xf32>
    %c0_9 = arith.constant 0 : index
    %c0_10 = arith.constant 0 : index
    %11 = vector.load %arg3[%c0_9, %c0_10] : memref<1x384xf32, #tpu.memory_space<vmem>>, vector<1x384xf32>
    %12 = vector.broadcast %11 : vector<1x384xf32> to vector<2x384xf32>
    %13 = arith.addf %10, %12 : vector<2x384xf32>
    %cst_11 = arith.constant 0.000000e+00 : f32
    %14 = vector.broadcast %cst_11 : f32 to vector<2x384xf32>
    %15 = arith.maximumf %13, %14 : vector<2x384xf32>
    %16 = vector.extract_strided_slice %15 {offsets = [0, 0], sizes = [2, 128], strides = [1, 1]} : vector<2x384xf32> to vector<2x128xf32>
    %17 = vector.extract_strided_slice %15 {offsets = [0, 128], sizes = [2, 128], strides = [1, 1]} : vector<2x384xf32> to vector<2x128xf32>
    %18 = vector.extract_strided_slice %15 {offsets = [0, 256], sizes = [2, 128], strides = [1, 1]} : vector<2x384xf32> to vector<2x128xf32>
    %19 = tpu.concatenate %16, %17, %18 in 0 : vector<2x128xf32>, vector<2x128xf32>, vector<2x128xf32> -> vector<6x128xf32>
    %c0_12 = arith.constant 0 : index
    %c0_13 = arith.constant 0 : index
    %c0_14 = arith.constant 0 : index
    %20 = vector.load %arg7[%c0_12, %c0_13, %c0_14] : memref<3x384x128xf32, #tpu.memory_space<vmem>>, vector<1x384x128xf32>
    %21 = vector.shape_cast %20 : vector<1x384x128xf32> to vector<384x128xf32>
    %c0_15 = arith.constant 0 : index
    %c0_16 = arith.constant 0 : index
    %c0_17 = arith.constant 0 : index
    %22 = vector.load %arg4[%c0_15, %c0_16, %c0_17] : memref<3x14x6xf32, #tpu.memory_space<vmem>>, vector<1x14x6xf32>
    %23 = vector.shape_cast %22 : vector<1x14x6xf32> to vector<14x6xf32>
    %cst_18 = arith.constant dense<0.000000e+00> : vector<14x128xf32>
    %24 = tpu.matmul %23, %19, %cst_18 {dimension_numbers = #tpu.dot_dimension_numbers<[1], [0], [0], [1], [0, 0, 1, 1], [], []>} : vector<14x6xf32>, vector<6x128xf32>, vector<14x128xf32> -> vector<14x128xf32>
    %c1 = arith.constant 1 : index
    %c0_19 = arith.constant 0 : index
    %c0_20 = arith.constant 0 : index
    %25 = vector.load %arg4[%c1, %c0_19, %c0_20] : memref<3x14x6xf32, #tpu.memory_space<vmem>>, vector<1x14x6xf32>
    %26 = vector.shape_cast %25 : vector<1x14x6xf32> to vector<14x6xf32>
    %cst_21 = arith.constant dense<0.000000e+00> : vector<14x128xf32>
    %27 = tpu.matmul %26, %19, %cst_21 {dimension_numbers = #tpu.dot_dimension_numbers<[1], [0], [0], [1], [0, 0, 1, 1], [], []>} : vector<14x6xf32>, vector<6x128xf32>, vector<14x128xf32> -> vector<14x128xf32>
    %c2 = arith.constant 2 : index
    %c0_22 = arith.constant 0 : index
    %c0_23 = arith.constant 0 : index
    %28 = vector.load %arg4[%c2, %c0_22, %c0_23] : memref<3x14x6xf32, #tpu.memory_space<vmem>>, vector<1x14x6xf32>
    %29 = vector.shape_cast %28 : vector<1x14x6xf32> to vector<14x6xf32>
    %cst_24 = arith.constant dense<0.000000e+00> : vector<14x128xf32>
    %30 = tpu.matmul %29, %19, %cst_24 {dimension_numbers = #tpu.dot_dimension_numbers<[1], [0], [0], [1], [0, 0, 1, 1], [], []>} : vector<14x6xf32>, vector<6x128xf32>, vector<14x128xf32> -> vector<14x128xf32>
    %31 = tpu.concatenate %24, %27, %30 in 1 : vector<14x128xf32>, vector<14x128xf32>, vector<14x128xf32> -> vector<14x384xf32>
    %cst_25 = arith.constant dense<0.000000e+00> : vector<14x128xf32>
    %32 = tpu.matmul %31, %21, %cst_25 {dimension_numbers = #tpu.dot_dimension_numbers<[1], [0], [0], [1], [0, 0, 1, 1], [], []>} : vector<14x384xf32>, vector<384x128xf32>, vector<14x128xf32> -> vector<14x128xf32>
    %c0_26 = arith.constant 0 : index
    %c0_27 = arith.constant 0 : index
    %33 = vector.load %arg8[%c0_26, %c0_27] : memref<128x24xf32, #tpu.memory_space<vmem>>, vector<128x16xf32>
    %c0_28 = arith.constant 0 : index
    %c0_29 = arith.constant 0 : index
    %34 = vector.load %arg9[%c0_28, %c0_29] : memref<24x128xf32, #tpu.memory_space<vmem>>, vector<16x128xf32>
    %35 = vector.extract_strided_slice %0 {offsets = [1, 0], sizes = [1, 16], strides = [1, 1]} : vector<6x128xf32> to vector<1x16xf32>
    %36 = vector.extract_strided_slice %0 {offsets = [2, 0], sizes = [1, 16], strides = [1, 1]} : vector<6x128xf32> to vector<1x16xf32>
    %cst_30 = arith.constant dense<0.000000e+00> : vector<128xf32>
    %37 = vector.multi_reduction <add>, %32, %cst_30 [0] : vector<14x128xf32> to vector<128xf32>
    %38 = vector.shape_cast %37 : vector<128xf32> to vector<1x128xf32>
    %39 = arith.mulf %32, %32 : vector<14x128xf32>
    %cst_31 = arith.constant dense<0.000000e+00> : vector<128xf32>
    %40 = vector.multi_reduction <add>, %39, %cst_31 [0] : vector<14x128xf32> to vector<128xf32>
    %41 = vector.shape_cast %40 : vector<128xf32> to vector<1x128xf32>
    %42 = tpu.concatenate %38, %41 in 0 : vector<1x128xf32>, vector<1x128xf32> -> vector<2x128xf32>
    %cst_32 = arith.constant dense<0.000000e+00> : vector<2x16xf32>
    %43 = tpu.matmul %42, %33, %cst_32 {dimension_numbers = #tpu.dot_dimension_numbers<[1], [0], [0], [1], [0, 0, 1, 1], [], []>} : vector<2x128xf32>, vector<128x16xf32>, vector<2x16xf32> -> vector<2x16xf32>
    %cst_33 = arith.constant 0.0102040814 : f32
    %44 = vector.broadcast %cst_33 : f32 to vector<2x16xf32>
    %45 = arith.mulf %43, %44 : vector<2x16xf32>
    %46 = vector.extract_strided_slice %45 {offsets = [0, 0], sizes = [1, 16], strides = [1, 1]} : vector<2x16xf32> to vector<1x16xf32>
    %47 = vector.extract_strided_slice %45 {offsets = [1, 0], sizes = [1, 16], strides = [1, 1]} : vector<2x16xf32> to vector<1x16xf32>
    %48 = arith.mulf %46, %46 : vector<1x16xf32>
    %49 = arith.subf %47, %48 : vector<1x16xf32>
    %cst_34 = arith.constant 0.000000e+00 : f32
    %50 = vector.broadcast %cst_34 : f32 to vector<1x16xf32>
    %51 = arith.maximumf %49, %50 : vector<1x16xf32>
    %cst_35 = arith.constant 9.99999974E-6 : f32
    %52 = vector.broadcast %cst_35 : f32 to vector<1x16xf32>
    %53 = arith.addf %51, %52 : vector<1x16xf32>
    %54 = math.rsqrt %53 : vector<1x16xf32>
    %55 = arith.mulf %35, %54 : vector<1x16xf32>
    %56 = arith.mulf %46, %55 : vector<1x16xf32>
    %57 = arith.subf %36, %56 : vector<1x16xf32>
    %58 = tpu.concatenate %55, %57 in 0 : vector<1x16xf32>, vector<1x16xf32> -> vector<2x16xf32>
    %cst_36 = arith.constant dense<0.000000e+00> : vector<2x128xf32>
    %59 = tpu.matmul %58, %34, %cst_36 {dimension_numbers = #tpu.dot_dimension_numbers<[1], [0], [0], [1], [0, 0, 1, 1], [], []>} : vector<2x16xf32>, vector<16x128xf32>, vector<2x128xf32> -> vector<2x128xf32>
    %60 = vector.extract_strided_slice %59 {offsets = [0, 0], sizes = [1, 128], strides = [1, 1]} : vector<2x128xf32> to vector<1x128xf32>
    %61 = vector.broadcast %60 : vector<1x128xf32> to vector<14x128xf32>
    %62 = arith.mulf %32, %61 : vector<14x128xf32>
    %63 = vector.extract_strided_slice %59 {offsets = [1, 0], sizes = [1, 128], strides = [1, 1]} : vector<2x128xf32> to vector<1x128xf32>
    %64 = vector.broadcast %63 : vector<1x128xf32> to vector<14x128xf32>
    %65 = arith.addf %62, %64 : vector<14x128xf32>
    %cst_37 = arith.constant 0.000000e+00 : f32
    %66 = vector.broadcast %cst_37 : f32 to vector<14x128xf32>
    %67 = arith.maximumf %65, %66 : vector<14x128xf32>
    %c1_38 = arith.constant 1 : index
    %c0_39 = arith.constant 0 : index
    %c0_40 = arith.constant 0 : index
    %68 = vector.load %arg7[%c1_38, %c0_39, %c0_40] : memref<3x384x128xf32, #tpu.memory_space<vmem>>, vector<1x384x128xf32>
    %69 = vector.shape_cast %68 : vector<1x384x128xf32> to vector<384x128xf32>
    %c0_41 = arith.constant 0 : index
    %c0_42 = arith.constant 0 : index
    %c0_43 = arith.constant 0 : index
    %70 = vector.load %arg5[%c0_41, %c0_42, %c0_43] : memref<3x28x14xf32, #tpu.memory_space<vmem>>, vector<1x28x14xf32>
    %71 = vector.shape_cast %70 : vector<1x28x14xf32> to vector<28x14xf32>
    %cst_44 = arith.constant dense<0.000000e+00> : vector<28x128xf32>
    %72 = tpu.matmul %71, %67, %cst_44 {dimension_numbers = #tpu.dot_dimension_numbers<[1], [0], [0], [1], [0, 0, 1, 1], [], []>} : vector<28x14xf32>, vector<14x128xf32>, vector<28x128xf32> -> vector<28x128xf32>
    %c1_45 = arith.constant 1 : index
    %c0_46 = arith.constant 0 : index
    %c0_47 = arith.constant 0 : index
    %73 = vector.load %arg5[%c1_45, %c0_46, %c0_47] : memref<3x28x14xf32, #tpu.memory_space<vmem>>, vector<1x28x14xf32>
    %74 = vector.shape_cast %73 : vector<1x28x14xf32> to vector<28x14xf32>
    %cst_48 = arith.constant dense<0.000000e+00> : vector<28x128xf32>
    %75 = tpu.matmul %74, %67, %cst_48 {dimension_numbers = #tpu.dot_dimension_numbers<[1], [0], [0], [1], [0, 0, 1, 1], [], []>} : vector<28x14xf32>, vector<14x128xf32>, vector<28x128xf32> -> vector<28x128xf32>
    %c2_49 = arith.constant 2 : index
    %c0_50 = arith.constant 0 : index
    %c0_51 = arith.constant 0 : index
    %76 = vector.load %arg5[%c2_49, %c0_50, %c0_51] : memref<3x28x14xf32, #tpu.memory_space<vmem>>, vector<1x28x14xf32>
    %77 = vector.shape_cast %76 : vector<1x28x14xf32> to vector<28x14xf32>
    %cst_52 = arith.constant dense<0.000000e+00> : vector<28x128xf32>
    %78 = tpu.matmul %77, %67, %cst_52 {dimension_numbers = #tpu.dot_dimension_numbers<[1], [0], [0], [1], [0, 0, 1, 1], [], []>} : vector<28x14xf32>, vector<14x128xf32>, vector<28x128xf32> -> vector<28x128xf32>
    %79 = tpu.concatenate %72, %75, %78 in 1 : vector<28x128xf32>, vector<28x128xf32>, vector<28x128xf32> -> vector<28x384xf32>
    %cst_53 = arith.constant dense<0.000000e+00> : vector<28x128xf32>
    %80 = tpu.matmul %79, %69, %cst_53 {dimension_numbers = #tpu.dot_dimension_numbers<[1], [0], [0], [1], [0, 0, 1, 1], [], []>} : vector<28x384xf32>, vector<384x128xf32>, vector<28x128xf32> -> vector<28x128xf32>
    %c0_54 = arith.constant 0 : index
    %c16 = arith.constant 16 : index
    %81 = vector.load %arg8[%c0_54, %c16] : memref<128x24xf32, #tpu.memory_space<vmem>>, vector<128x8xf32>
    %c16_55 = arith.constant 16 : index
    %c0_56 = arith.constant 0 : index
    %82 = vector.load %arg9[%c16_55, %c0_56] : memref<24x128xf32, #tpu.memory_space<vmem>>, vector<8x128xf32>
    %83 = vector.extract_strided_slice %0 {offsets = [3, 0], sizes = [1, 8], strides = [1, 1]} : vector<6x128xf32> to vector<1x8xf32>
    %84 = vector.extract_strided_slice %0 {offsets = [4, 0], sizes = [1, 8], strides = [1, 1]} : vector<6x128xf32> to vector<1x8xf32>
    %cst_57 = arith.constant dense<0.000000e+00> : vector<128xf32>
    %85 = vector.multi_reduction <add>, %80, %cst_57 [0] : vector<28x128xf32> to vector<128xf32>
    %86 = vector.shape_cast %85 : vector<128xf32> to vector<1x128xf32>
    %87 = arith.mulf %80, %80 : vector<28x128xf32>
    %cst_58 = arith.constant dense<0.000000e+00> : vector<128xf32>
    %88 = vector.multi_reduction <add>, %87, %cst_58 [0] : vector<28x128xf32> to vector<128xf32>
    %89 = vector.shape_cast %88 : vector<128xf32> to vector<1x128xf32>
    %90 = tpu.concatenate %86, %89 in 0 : vector<1x128xf32>, vector<1x128xf32> -> vector<2x128xf32>
    %cst_59 = arith.constant dense<0.000000e+00> : vector<2x8xf32>
    %91 = tpu.matmul %90, %81, %cst_59 {dimension_numbers = #tpu.dot_dimension_numbers<[1], [0], [0], [1], [0, 0, 1, 1], [], []>} : vector<2x128xf32>, vector<128x8xf32>, vector<2x8xf32> -> vector<2x8xf32>
    %cst_60 = arith.constant 0.00255102036 : f32
    %92 = vector.broadcast %cst_60 : f32 to vector<2x8xf32>
    %93 = arith.mulf %91, %92 : vector<2x8xf32>
    %94 = vector.extract_strided_slice %93 {offsets = [0, 0], sizes = [1, 8], strides = [1, 1]} : vector<2x8xf32> to vector<1x8xf32>
    %95 = vector.extract_strided_slice %93 {offsets = [1, 0], sizes = [1, 8], strides = [1, 1]} : vector<2x8xf32> to vector<1x8xf32>
    %96 = arith.mulf %94, %94 : vector<1x8xf32>
    %97 = arith.subf %95, %96 : vector<1x8xf32>
    %cst_61 = arith.constant 0.000000e+00 : f32
    %98 = vector.broadcast %cst_61 : f32 to vector<1x8xf32>
    %99 = arith.maximumf %97, %98 : vector<1x8xf32>
    %cst_62 = arith.constant 9.99999974E-6 : f32
    %100 = vector.broadcast %cst_62 : f32 to vector<1x8xf32>
    %101 = arith.addf %99, %100 : vector<1x8xf32>
    %102 = math.rsqrt %101 : vector<1x8xf32>
    %103 = arith.mulf %83, %102 : vector<1x8xf32>
    %104 = arith.mulf %94, %103 : vector<1x8xf32>
    %105 = arith.subf %84, %104 : vector<1x8xf32>
    %106 = tpu.concatenate %103, %105 in 0 : vector<1x8xf32>, vector<1x8xf32> -> vector<2x8xf32>
    %cst_63 = arith.constant dense<0.000000e+00> : vector<2x128xf32>
    %107 = tpu.matmul %106, %82, %cst_63 {dimension_numbers = #tpu.dot_dimension_numbers<[1], [0], [0], [1], [0, 0, 1, 1], [], []>} : vector<2x8xf32>, vector<8x128xf32>, vector<2x128xf32> -> vector<2x128xf32>
    %108 = vector.extract_strided_slice %107 {offsets = [0, 0], sizes = [1, 128], strides = [1, 1]} : vector<2x128xf32> to vector<1x128xf32>
    %109 = vector.broadcast %108 : vector<1x128xf32> to vector<28x128xf32>
    %110 = arith.mulf %80, %109 : vector<28x128xf32>
    %111 = vector.extract_strided_slice %107 {offsets = [1, 0], sizes = [1, 128], strides = [1, 1]} : vector<2x128xf32> to vector<1x128xf32>
    %112 = vector.broadcast %111 : vector<1x128xf32> to vector<28x128xf32>
    %113 = arith.addf %110, %112 : vector<28x128xf32>
    %cst_64 = arith.constant 0.000000e+00 : f32
    %114 = vector.broadcast %cst_64 : f32 to vector<28x128xf32>
    %115 = arith.maximumf %113, %114 : vector<28x128xf32>
    %c2_65 = arith.constant 2 : index
    %c0_66 = arith.constant 0 : index
    %c0_67 = arith.constant 0 : index
    %116 = vector.load %arg7[%c2_65, %c0_66, %c0_67] : memref<3x384x128xf32, #tpu.memory_space<vmem>>, vector<1x384x128xf32>
    %117 = vector.shape_cast %116 : vector<1x384x128xf32> to vector<384x128xf32>
    %c0_68 = arith.constant 0 : index
    %c0_69 = arith.constant 0 : index
    %c0_70 = arith.constant 0 : index
    %118 = vector.load %arg6[%c0_68, %c0_69, %c0_70] : memref<3x56x28xf32, #tpu.memory_space<vmem>>, vector<1x56x28xf32>
    %119 = vector.shape_cast %118 : vector<1x56x28xf32> to vector<56x28xf32>
    %cst_71 = arith.constant dense<0.000000e+00> : vector<56x128xf32>
    %120 = tpu.matmul %119, %115, %cst_71 {dimension_numbers = #tpu.dot_dimension_numbers<[1], [0], [0], [1], [0, 0, 1, 1], [], []>} : vector<56x28xf32>, vector<28x128xf32>, vector<56x128xf32> -> vector<56x128xf32>
    %c1_72 = arith.constant 1 : index
    %c0_73 = arith.constant 0 : index
    %c0_74 = arith.constant 0 : index
    %121 = vector.load %arg6[%c1_72, %c0_73, %c0_74] : memref<3x56x28xf32, #tpu.memory_space<vmem>>, vector<1x56x28xf32>
    %122 = vector.shape_cast %121 : vector<1x56x28xf32> to vector<56x28xf32>
    %cst_75 = arith.constant dense<0.000000e+00> : vector<56x128xf32>
    %123 = tpu.matmul %122, %115, %cst_75 {dimension_numbers = #tpu.dot_dimension_numbers<[1], [0], [0], [1], [0, 0, 1, 1], [], []>} : vector<56x28xf32>, vector<28x128xf32>, vector<56x128xf32> -> vector<56x128xf32>
    %c2_76 = arith.constant 2 : index
    %c0_77 = arith.constant 0 : index
    %c0_78 = arith.constant 0 : index
    %124 = vector.load %arg6[%c2_76, %c0_77, %c0_78] : memref<3x56x28xf32, #tpu.memory_space<vmem>>, vector<1x56x28xf32>
    %125 = vector.shape_cast %124 : vector<1x56x28xf32> to vector<56x28xf32>
    %cst_79 = arith.constant dense<0.000000e+00> : vector<56x128xf32>
    %126 = tpu.matmul %125, %115, %cst_79 {dimension_numbers = #tpu.dot_dimension_numbers<[1], [0], [0], [1], [0, 0, 1, 1], [], []>} : vector<56x28xf32>, vector<28x128xf32>, vector<56x128xf32> -> vector<56x128xf32>
    %127 = tpu.concatenate %120, %123, %126 in 1 : vector<56x128xf32>, vector<56x128xf32>, vector<56x128xf32> -> vector<56x384xf32>
    %cst_80 = arith.constant dense<0.000000e+00> : vector<56x128xf32>
    %128 = tpu.matmul %127, %117, %cst_80 {dimension_numbers = #tpu.dot_dimension_numbers<[1], [0], [0], [1], [0, 0, 1, 1], [], []>} : vector<56x384xf32>, vector<384x128xf32>, vector<56x128xf32> -> vector<56x128xf32>
    %129 = vector.extract_strided_slice %0 {offsets = [5, 0], sizes = [1, 128], strides = [1, 1]} : vector<6x128xf32> to vector<1x128xf32>
    %130 = vector.broadcast %129 : vector<1x128xf32> to vector<56x128xf32>
    %131 = arith.addf %128, %130 : vector<56x128xf32>
    %cst_81 = arith.constant 5.000000e-01 : f32
    %132 = vector.broadcast %cst_81 : f32 to vector<56x128xf32>
    %133 = arith.mulf %132, %131 : vector<56x128xf32>
    %134 = math.tanh %133 : vector<56x128xf32>
    %cst_82 = arith.constant 1.000000e+00 : f32
    %135 = vector.broadcast %cst_82 : f32 to vector<56x128xf32>
    %136 = arith.addf %134, %135 : vector<56x128xf32>
    %cst_83 = arith.constant 5.000000e-01 : f32
    %137 = vector.broadcast %cst_83 : f32 to vector<56x128xf32>
    %138 = arith.mulf %137, %136 : vector<56x128xf32>
    %c0_84 = arith.constant 0 : index
    %c0_85 = arith.constant 0 : index
    %139 = vector.load %arg11[%c0_84, %c0_85] : memref<56x128xf32, #tpu.memory_space<vmem>>, vector<56x128xf32>
    tpu.vector_store %arg11[%c0_84, %c0_85], %138 {strides = array<i32>} : memref<56x128xf32, #tpu.memory_space<vmem>>, vector<56x128xf32>,
    return
  }
}

</mosaic_0001>

<llo_original>
// kernel: decoder_forward.1
$region0: #{decoder_forward.1}
  #allocation0 [shape = 'u32[]', space=smem, size = 0x4, offset = 0x4, fixed_abs, tag = 'smem constant byte address 0x4 - core index']
  #allocation1 [shape = 'u32[144,128]{1,0:T(1,128)}', space=vmem, size = 0x12000, scoped, tag = 'internal scratch']
  %s0 = inlined_call_operand.vmem [shape: f32[2,4], index: 0, kind: input, shape index: {}]
  %s1 = inlined_call_operand.vmem [shape: f32[4,128], index: 1, kind: input, shape index: {}]
  %s2 = inlined_call_operand.vmem [shape: f32[128,384], index: 2, kind: input, shape index: {}]
  %s3 = inlined_call_operand.vmem [shape: f32[1,384], index: 3, kind: input, shape index: {}]
  %s4 = inlined_call_operand.vmem [shape: f32[3,14,6], index: 4, kind: input, shape index: {}]
  %s5 = inlined_call_operand.vmem [shape: f32[3,28,14], index: 5, kind: input, shape index: {}]
  %s6 = inlined_call_operand.vmem [shape: f32[3,56,28], index: 6, kind: input, shape index: {}]
  %s7 = inlined_call_operand.hbm [shape: f32[3,384,128], index: 7, kind: input, shape index: {}]
  %s8 = inlined_call_operand.vmem [shape: f32[128,24], index: 8, kind: input, shape index: {}]
  %s9 = inlined_call_operand.vmem [shape: f32[24,128], index: 9, kind: input, shape index: {}]
  %s10 = inlined_call_operand.vmem [shape: f32[6,128], index: 10, kind: input, shape index: {}]
  %s11 = inlined_call_operand.hbm [shape: f32[56,128], index: 11, kind: output, shape index: {}]
  %s12 = sld [smem:[#allocation0]]
  $region58: #{decoder_forward.1} parent=0
    _
  %s14 = ssub.s32 1, %s12
  %s15 = scalar_select 0, %s14, %s12
  $region1: #{decoder_forward.1} parent=0
    #allocation2 [shape = 'u8[589824]{0}', space=vmem, size = 0x90000, scoped, tag = 'input window, operand 7, single buffered']
    #allocation3 [shape = 's32[1]{0}', space=sflag, size = 0x4, scoped, tag = 'scoped memory for decoder_forward.1']
    #allocation4 [shape = 's32[1]{0}', space=sflag, size = 0x4, scoped, tag = 'scoped memory for decoder_forward.1']
    #allocation5 [shape = 'u8[28672]{0}', space=vmem, size = 0x7000, scoped, tag = 'output window, operand 0, single buffered']
    %16 = vsyncpa [#allocation3], 0
    %17 = vsyncpa [#allocation4], 0
    // Predicated region
    $region2: #{decoder_forward.1} parent=1 // pred_check
      _
    $region3: #{decoder_forward.1} parent=1 // pred_check_branch
      %19 = sbr.rel (0) target = $region5
    $region4: #{decoder_forward.1} parent=1 // pred_region
      _
    $region5: #{decoder_forward.1} parent=1 // pred_fallthru
      _
    // Predicated region
    $region6: #{decoder_forward.1} parent=1 // pred_check
      _
    $region7: #{decoder_forward.1} parent=1 // pred_check_branch
      %21 = sbr.rel (0) target = $region9
    $region8: #{decoder_forward.1} parent=1 // pred_region
      _
    $region9: #{decoder_forward.1} parent=1 // pred_fallthru
      _
    // Predicated region
    $region10: #{decoder_forward.1} parent=1 // pred_check
      _
    $region11: #{decoder_forward.1} parent=1 // pred_check_branch
      %23 = sbr.rel (0) target = $region13
    $region12: #{decoder_forward.1} parent=1 // pred_region
      _
    $region13: #{decoder_forward.1} parent=1 // pred_fallthru
      _
    // Predicated region
    $region14: #{decoder_forward.1} parent=1 // pred_check
      _
    $region15: #{decoder_forward.1} parent=1 // pred_check_branch
      %25 = sbr.rel (0) target = $region17
    $region16: #{decoder_forward.1} parent=1 // pred_region
      _
    $region17: #{decoder_forward.1} parent=1 // pred_fallthru
      _
    // Predicated region
    $region18: #{decoder_forward.1} parent=1 // pred_check
      _
    $region19: #{decoder_forward.1} parent=1 // pred_check_branch
      %27 = sbr.rel (0) target = $region21
    $region20: #{decoder_forward.1} parent=1 // pred_region
      _
    $region21: #{decoder_forward.1} parent=1 // pred_fallthru
      _
    // Predicated region
    $region22: #{decoder_forward.1} parent=1 // pred_check
      _
    $region23: #{decoder_forward.1} parent=1 // pred_check_branch
      %29 = sbr.rel (0) target = $region25
    $region24: #{decoder_forward.1} parent=1 // pred_region
      _
    $region25: #{decoder_forward.1} parent=1 // pred_fallthru
      _
    // Predicated region
    $region26: #{decoder_forward.1} parent=1 // pred_check
      _
    $region27: #{decoder_forward.1} parent=1 // pred_check_branch
      %31 = sbr.rel (0) target = $region29
    $region28: #{decoder_forward.1} parent=1 // pred_region
      _
    $region29: #{decoder_forward.1} parent=1 // pred_fallthru
      _
    // Predicated region
    $region30: #{decoder_forward.1} parent=1 // pred_check
      _
    $region31: #{decoder_forward.1} parent=1 // pred_check_branch
      %33 = sbr.rel (0) target = $region33
    $region32: #{decoder_forward.1} parent=1 // pred_region
      %s35 = ssub.s32 18432, 18432
      %36 = vsyncadd [#allocation3], %s35
      %s37 = sshll.u32 [#allocation2], 4
      %s38 = int_to_ptr.vmem [resolvable:$true] %s37
      %43 = dma.hbm_to_vmem [thread:$0]  %s7, 18432, %s38, [#allocation3], 128, 128, 8
    $region33: #{decoder_forward.1} parent=1 // pred_fallthru
      _
    // Predicated region
    $region34: #{decoder_forward.1} parent=1 // pred_check
      _
    $region35: #{decoder_forward.1} parent=1 // pred_check_branch
      %45 = sbr.rel (0) target = $region37
    $region36: #{decoder_forward.1} parent=1 // pred_region
      _
    $region37: #{decoder_forward.1} parent=1 // pred_fallthru
      _
    // Predicated region
    $region38: #{decoder_forward.1} parent=1 // pred_check
      _
    $region39: #{decoder_forward.1} parent=1 // pred_check_branch
      %47 = sbr.rel (0) target = $region41
    $region40: #{decoder_forward.1} parent=1 // pred_region
      _
    $region41: #{decoder_forward.1} parent=1 // pred_fallthru
      _
    // Predicated region
    $region42: #{decoder_forward.1} parent=1 // pred_check
      _
    $region43: #{decoder_forward.1} parent=1 // pred_check_branch
      %49 = sbr.rel (0) target = $region45
    $region44: #{decoder_forward.1} parent=1 // pred_region
      _
    $region45: #{decoder_forward.1} parent=1 // pred_fallthru
      _
    // Predicated region
    $region46: #{decoder_forward.1} parent=1 // pred_check
      _
    $region47: #{decoder_forward.1} parent=1 // pred_check_branch
      %51 = sbr.rel (0) target = $region49
    $region48: #{decoder_forward.1} parent=1 // pred_region
      %52 = dma.done [#allocation3], 18432
    $region49: #{decoder_forward.1} parent=1 // pred_fallthru
      _
    %v53 = vld [vmem:[%s10] sm:$0x3f]
    %v54 = vld [vmem:[%s0] sm:$0x3]
    %v55 = vld [vmem:[%s1] sm:$0xf]
    %v56 = vlaneseq
    %v57 = vshrl.u32 %v56, 7
    %v58 = vsub.s32 0, %v57
    %v59 = vrot.slane %v53, %v58
    %vm60 = vcmask 31744
    %v62 = vsel %vm60, %v54, 0
    %vm64 = vcmask 1043456
    %v66 = vsel %vm64, %v55, 0
    %68 = vmatprep.subr.mxu0 0.0
    %69 = vmatpush1.msra.mxu0 %v66
    %70 = vmatprep.subr.mxu0 0.0
    %71 = vmatpush1.msra.mxu0 0.0
    %72 = vmatprep.subr.mxu0 0.0
    %73 = vmatpush1.msra.mxu0 0.0
    %74 = vmatprep.subr.mxu0 0.0
    %75 = vmatpush1.msra.mxu0 0.0
    %76 = vmatprep.subr.mxu0 0.0
    %77 = vmatpush1.msra.mxu0 0.0
    %78 = vmatprep.subr.mxu0 0.0
    %79 = vmatpush1.msra.mxu0 0.0
    %80 = vmatprep.subr.mxu0 0.0
    %81 = vmatpush1.msra.mxu0 0.0
    %82 = vmatprep.subr.mxu0 0.0
    %83 = vmatpush1.msra.mxu0 0.0
    %84 = vmatprep.subr.mxu0 0.0
    %85 = vmatpush1.msra.mxu0 0.0
    %86 = vmatprep.subr.mxu0 0.0
    %87 = vmatpush1.msra.mxu0 0.0
    %88 = vmatprep.subr.mxu0 0.0
    %89 = vmatpush1.msra.mxu0 0.0
    %90 = vmatprep.subr.mxu0 0.0
    %91 = vmatpush1.msra.mxu0 0.0
    %92 = vmatprep.subr.mxu0 0.0
    %93 = vmatpush1.msra.mxu0 0.0
    %94 = vmatprep.subr.mxu0 0.0
    %95 = vmatpush1.msra.mxu0 0.0
    %96 = vmatprep.subr.mxu0 0.0
    %97 = vmatpush1.msra.mxu0 0.0
    %98 = vmatprep.subr.mxu0 0.0
    %99 = vmatpush1.msra.mxu0 0.0
    %100 = vmatprep.subr.mxu0 0.0
    %101 = vmatpush1.msra.mxu0 0.0
    %102 = vmatprep.subr.mxu0 0.0
    %103 = vmatpush1.msra.mxu0 0.0
    %104 = vmatprep.subr.mxu0 0.0
    %105 = vmatpush1.msra.mxu0 0.0
    %106 = vmatprep.subr.mxu0 0.0
    %107 = vmatpush1.msra.mxu0 0.0
    %108 = vmatprep.subr.mxu0 0.0
    %109 = vmatpush1.msra.mxu0 0.0
    %110 = vmatprep.subr.mxu0 0.0
    %111 = vmatpush1.msra.mxu0 0.0
    %112 = vmatprep.subr.mxu0 0.0
    %113 = vmatpush1.msra.mxu0 0.0
    %114 = vmatprep.subr.mxu0 0.0
    %115 = vmatpush1.msra.mxu0 0.0
    %116 = vmatprep.subr.mxu0 0.0
    %117 = vmatpush1.msra.mxu0 0.0
    %118 = vmatprep.subr.mxu0 0.0
    %119 = vmatpush1.msra.mxu0 0.0
    %120 = vmatprep.subr.mxu0 0.0
    %121 = vmatpush1.msra.mxu0 0.0
    %122 = vmatprep.subr.mxu0 0.0
    %123 = vmatpush1.msra.mxu0 0.0
    %124 = vmatprep.subr.mxu0 0.0
    %125 = vmatpush1.msra.mxu0 0.0
    %126 = vmatprep.subr.mxu0 0.0
    %127 = vmatpush1.msra.mxu0 0.0
    %128 = vmatprep.subr.mxu0 0.0
    %129 = vmatpush1.msra.mxu0 0.0
    %130 = vmatprep.subr.mxu0 0.0
    %131 = vmatpush1.msra.mxu0 0.0
    %132 = vmatprep.mubr.f32.mxu0 0.0
    %133 = vmatmul.mubr.f32.gmra.mrb[0].mxu0 %v62
    %v134 = vpop.f32.mrb[0].mxu0
    %v135 = vadd.f32 %v59, %v134
    %v136 = vpop.f32.mrb[0].mxu0
    %137 = vdwg.mxu0
    %v138 = vmax.f32 %v135, 0.0
    %v139 = vld [vmem:[%s2] sm:$0xff]
    %v140 = vld [vmem:[%s2 + $0x8] sm:$0xff]
    %v141 = vld [vmem:[%s2 + $0x10] sm:$0xff]
    %v142 = vld [vmem:[%s2 + $0x18] sm:$0xff]
    %v143 = vld [vmem:[%s2 + $0x20] sm:$0xff]
    %v144 = vld [vmem:[%s2 + $0x28] sm:$0xff]
    %v145 = vld [vmem:[%s2 + $0x30] sm:$0xff]
    %v146 = vld [vmem:[%s2 + $0x38] sm:$0xff]
    %v147 = vld [vmem:[%s2 + $0x40] sm:$0xff]
    %v148 = vld [vmem:[%s2 + $0x48] sm:$0xff]
    %v149 = vld [vmem:[%s2 + $0x50] sm:$0xff]
    %v150 = vld [vmem:[%s2 + $0x58] sm:$0xff]
    %v151 = vld [vmem:[%s2 + $0x60] sm:$0xff]
    %v152 = vld [vmem:[%s2 + $0x68] sm:$0xff]
    %v153 = vld [vmem:[%s2 + $0x70] sm:$0xff]
    %v154 = vld [vmem:[%s2 + $0x78] sm:$0xff]
    %v155 = vld [vmem:[%s2 + $0x80] sm:$0xff]
    %v156 = vld [vmem:[%s2 + $0x88] sm:$0xff]
    %v157 = vld [vmem:[%s2 + $0x90] sm:$0xff]
    %v158 = vld [vmem:[%s2 + $0x98] sm:$0xff]
    %v159 = vld [vmem:[%s2 + $0xa0] sm:$0xff]
    %v160 = vld [vmem:[%s2 + $0xa8] sm:$0xff]
    %v161 = vld [vmem:[%s2 + $0xb0] sm:$0xff]
    %v162 = vld [vmem:[%s2 + $0xb8] sm:$0xff]
    %v163 = vld [vmem:[%s2 + $0xc0] sm:$0xff]
    %v164 = vld [vmem:[%s2 + $0xc8] sm:$0xff]
    %v165 = vld [vmem:[%s2 + $0xd0] sm:$0xff]
    %v166 = vld [vmem:[%s2 + $0xd8] sm:$0xff]
    %v167 = vld [vmem:[%s2 + $0xe0] sm:$0xff]
    %v168 = vld [vmem:[%s2 + $0xe8] sm:$0xff]
    %v169 = vld [vmem:[%s2 + $0xf0] sm:$0xff]
    %v170 = vld [vmem:[%s2 + $0xf8] sm:$0xff]
    %v171 = vld [vmem:[%s2 + $0x100] sm:$0xff]
    %v172 = vld [vmem:[%s2 + $0x108] sm:$0xff]
    %v173 = vld [vmem:[%s2 + $0x110] sm:$0xff]
    %v174 = vld [vmem:[%s2 + $0x118] sm:$0xff]
    %v175 = vld [vmem:[%s2 + $0x120] sm:$0xff]
    %v176 = vld [vmem:[%s2 + $0x128] sm:$0xff]
    %v177 = vld [vmem:[%s2 + $0x130] sm:$0xff]
    %v178 = vld [vmem:[%s2 + $0x138] sm:$0xff]
    %v179 = vld [vmem:[%s2 + $0x140] sm:$0xff]
    %v180 = vld [vmem:[%s2 + $0x148] sm:$0xff]
    %v181 = vld [vmem:[%s2 + $0x150] sm:$0xff]
    %v182 = vld [vmem:[%s2 + $0x158] sm:$0xff]
    %v183 = vld [vmem:[%s2 + $0x160] sm:$0xff]
    %v184 = vld [vmem:[%s2 + $0x168] sm:$0xff]
    %v185 = vld [vmem:[%s2 + $0x170] sm:$0xff]
    %v186 = vld [vmem:[%s2 + $0x178] sm:$0xff]
    %v187 = vld [vmem:[%s3] sm:$0x7]
    %v189 = vlaneseq
    %v190 = vshrl.u32 %v189, 7
    %v191 = vsub.s32 0, %v190
    %v192 = vrot.slane %v187, %v191
    %v193 = vlaneseq
    %v194 = vshrl.u32 %v193, 7
    %v195 = vsub.s32 1, %v194
    %v196 = vrot.slane %v187, %v195
    %v197 = vlaneseq
    %v198 = vshrl.u32 %v197, 7
    %v199 = vsub.s32 2, %v198
    %v200 = vrot.slane %v187, %v199
    %204 = vmatprep.subr.mxu0 %v140
    %205 = vmatpush1.msra.mxu0 %v139
    %206 = vmatprep.subr.mxu0 %v143
    %207 = vmatpush1.msra.mxu0 %v142
    %208 = vmatprep.subr.mxu0 %v146
    %209 = vmatpush1.msra.mxu0 %v145
    %210 = vmatprep.subr.mxu0 %v149
    %211 = vmatpush1.msra.mxu0 %v148
    %212 = vmatprep.subr.mxu0 %v152
    %213 = vmatpush1.msra.mxu0 %v151
    %214 = vmatprep.subr.mxu0 %v155
    %215 = vmatpush1.msra.mxu0 %v154
    %216 = vmatprep.subr.mxu0 %v158
    %217 = vmatpush1.msra.mxu0 %v157
    %218 = vmatprep.subr.mxu0 %v161
    %219 = vmatpush1.msra.mxu0 %v160
    %220 = vmatprep.subr.mxu0 %v164
    %221 = vmatpush1.msra.mxu0 %v163
    %222 = vmatprep.subr.mxu0 %v167
    %223 = vmatpush1.msra.mxu0 %v166
    %224 = vmatprep.subr.mxu0 %v170
    %225 = vmatpush1.msra.mxu0 %v169
    %226 = vmatprep.subr.mxu0 %v173
    %227 = vmatpush1.msra.mxu0 %v172
    %228 = vmatprep.subr.mxu0 %v176
    %229 = vmatpush1.msra.mxu0 %v175
    %230 = vmatprep.subr.mxu0 %v179
    %231 = vmatpush1.msra.mxu0 %v178
    %232 = vmatprep.subr.mxu0 %v182
    %233 = vmatpush1.msra.mxu0 %v181
    %234 = vmatprep.subr.mxu0 %v185
    %235 = vmatpush1.msra.mxu0 %v184
    %236 = vmatprep.subr.mxu0 0.0
    %237 = vmatpush1.msra.mxu0 0.0
    %238 = vmatprep.subr.mxu0 0.0
    %239 = vmatpush1.msra.mxu0 0.0
    %240 = vmatprep.subr.mxu0 0.0
    %241 = vmatpush1.msra.mxu0 0.0
    %242 = vmatprep.subr.mxu0 0.0
    %243 = vmatpush1.msra.mxu0 0.0
    %244 = vmatprep.subr.mxu0 0.0
    %245 = vmatpush1.msra.mxu0 0.0
    %246 = vmatprep.subr.mxu0 0.0
    %247 = vmatpush1.msra.mxu0 0.0
    %248 = vmatprep.subr.mxu0 0.0
    %249 = vmatpush1.msra.mxu0 0.0
    %250 = vmatprep.subr.mxu0 0.0
    %251 = vmatpush1.msra.mxu0 0.0
    %252 = vmatprep.subr.mxu0 0.0
    %253 = vmatpush1.msra.mxu0 0.0
    %254 = vmatprep.subr.mxu0 0.0
    %255 = vmatpush1.msra.mxu0 0.0
    %256 = vmatprep.subr.mxu0 0.0
    %257 = vmatpush1.msra.mxu0 0.0
    %258 = vmatprep.subr.mxu0 0.0
    %259 = vmatpush1.msra.mxu0 0.0
    %260 = vmatprep.subr.mxu0 0.0
    %261 = vmatpush1.msra.mxu0 0.0
    %262 = vmatprep.subr.mxu0 0.0
    %263 = vmatpush1.msra.mxu0 0.0
    %264 = vmatprep.subr.mxu0 0.0
    %265 = vmatpush1.msra.mxu0 0.0
    %266 = vmatprep.subr.mxu0 0.0
    %267 = vmatpush1.msra.mxu0 0.0
    %268 = vmatprep.mubr.f32.mxu0 0.0
    %269 = vmatmul.mubr.f32.gmra.mrb[0].mxu0 %v138
    %v270 = vpop.f32.mrb[0].mxu0
    %v271 = vadd.f32 %v192, %v270
    %v272 = vpop.f32.mrb[0].mxu0
    %v273 = vadd.f32 %v196, %v272
    %274 = vdwg.mxu0
    %275 = vmatprep.subr.mxu0 0.0
    %276 = vmatpush1.msra.mxu0 %v141
    %277 = vmatprep.subr.mxu0 0.0
    %278 = vmatpush1.msra.mxu0 %v144
    %279 = vmatprep.subr.mxu0 0.0
    %280 = vmatpush1.msra.mxu0 %v147
    %281 = vmatprep.subr.mxu0 0.0
    %282 = vmatpush1.msra.mxu0 %v150
    %283 = vmatprep.subr.mxu0 0.0
    %284 = vmatpush1.msra.mxu0 %v153
    %285 = vmatprep.subr.mxu0 0.0
    %286 = vmatpush1.msra.mxu0 %v156
    %287 = vmatprep.subr.mxu0 0.0
    %288 = vmatpush1.msra.mxu0 %v159
    %289 = vmatprep.subr.mxu0 0.0
    %290 = vmatpush1.msra.mxu0 %v162
    %291 = vmatprep.subr.mxu0 0.0
    %292 = vmatpush1.msra.mxu0 %v165
    %293 = vmatprep.subr.mxu0 0.0
    %294 = vmatpush1.msra.mxu0 %v168
    %295 = vmatprep.subr.mxu0 0.0
    %296 = vmatpush1.msra.mxu0 %v171
    %297 = vmatprep.subr.mxu0 0.0
    %298 = vmatpush1.msra.mxu0 %v174
    %299 = vmatprep.subr.mxu0 0.0
    %300 = vmatpush1.msra.mxu0 %v177
    %301 = vmatprep.subr.mxu0 0.0
    %302 = vmatpush1.msra.mxu0 %v180
    %303 = vmatprep.subr.mxu0 0.0
    %304 = vmatpush1.msra.mxu0 %v183
    %305 = vmatprep.subr.mxu0 0.0
    %306 = vmatpush1.msra.mxu0 %v186
    %307 = vmatprep.subr.mxu0 0.0
    %308 = vmatpush1.msra.mxu0 0.0
    %309 = vmatprep.subr.mxu0 0.0
    %310 = vmatpush1.msra.mxu0 0.0
    %311 = vmatprep.subr.mxu0 0.0
    %312 = vmatpush1.msra.mxu0 0.0
    %313 = vmatprep.subr.mxu0 0.0
    %314 = vmatpush1.msra.mxu0 0.0
    %315 = vmatprep.subr.mxu0 0.0
    %316 = vmatpush1.msra.mxu0 0.0
    %317 = vmatprep.subr.mxu0 0.0
    %318 = vmatpush1.msra.mxu0 0.0
    %319 = vmatprep.subr.mxu0 0.0
    %320 = vmatpush1.msra.mxu0 0.0
    %321 = vmatprep.subr.mxu0 0.0
    %322 = vmatpush1.msra.mxu0 0.0
    %323 = vmatprep.subr.mxu0 0.0
    %324 = vmatpush1.msra.mxu0 0.0
    %325 = vmatprep.subr.mxu0 0.0
    %326 = vmatpush1.msra.mxu0 0.0
    %327 = vmatprep.subr.mxu0 0.0
    %328 = vmatpush1.msra.mxu0 0.0
    %329 = vmatprep.subr.mxu0 0.0
    %330 = vmatpush1.msra.mxu0 0.0
    %331 = vmatprep.subr.mxu0 0.0
    %332 = vmatpush1.msra.mxu0 0.0
    %333 = vmatprep.subr.mxu0 0.0
    %334 = vmatpush1.msra.mxu0 0.0
    %335 = vmatprep.subr.mxu0 0.0
    %336 = vmatpush1.msra.mxu0 0.0
    %337 = vmatprep.subr.mxu0 0.0
    %338 = vmatpush1.msra.mxu0 0.0
    %339 = vmatprep.mubr.f32.mxu0 0.0
    %340 = vmatmul.mubr.f32.gmra.mrb[0].mxu0 %v138
    %v341 = vpop.f32.mrb[0].mxu0
    %v342 = vadd.f32 %v200, %v341
    %v343 = vpop.f32.mrb[0].mxu0
    %344 = vdwg.mxu0
    %v345 = vmax.f32 %v271, 0.0
    %v346 = vmax.f32 %v273, 0.0
    %v347 = vmax.f32 %v342, 0.0
    %v349 = vrot.slane %v346, 6
    %v352 = vrot.slane %v347, 4
    %vm354 = vcmask 1041408
    %v355 = vsel %vm354, %v345, %v349
    %v356 = vsel %vm64, %v355, %v352
    %v357 = vld [vmem:[#allocation2] sm:$0xff]
    %v358 = vld [vmem:[#allocation2 + $0x8] sm:$0xff]
    %v359 = vld [vmem:[#allocation2 + $0x10] sm:$0xff]
    %v360 = vld [vmem:[#allocation2 + $0x18] sm:$0xff]
    %v361 = vld [vmem:[#allocation2 + $0x20] sm:$0xff]
    %v362 = vld [vmem:[#allocation2 + $0x28] sm:$0xff]
    %v363 = vld [vmem:[#allocation2 + $0x30] sm:$0xff]
    %v364 = vld [vmem:[#allocation2 + $0x38] sm:$0xff]
    %v365 = vld [vmem:[#allocation2 + $0x40] sm:$0xff]
    %v366 = vld [vmem:[#allocation2 + $0x48] sm:$0xff]
    %v367 = vld [vmem:[#allocation2 + $0x50] sm:$0xff]
    %v368 = vld [vmem:[#allocation2 + $0x58] sm:$0xff]
    %v369 = vld [vmem:[#allocation2 + $0x60] sm:$0xff]
    %v370 = vld [vmem:[#allocation2 + $0x68] sm:$0xff]
    %v371 = vld [vmem:[#allocation2 + $0x70] sm:$0xff]
    %v372 = vld [vmem:[#allocation2 + $0x78] sm:$0xff]
    %v373 = vld [vmem:[#allocation2 + $0x80] sm:$0xff]
    %v374 = vld [vmem:[#allocation2 + $0x88] sm:$0xff]
    %v375 = vld [vmem:[#allocation2 + $0x90] sm:$0xff]
    %v376 = vld [vmem:[#allocation2 + $0x98] sm:$0xff]
    %v377 = vld [vmem:[#allocation2 + $0xa0] sm:$0xff]
    %v378 = vld [vmem:[#allocation2 + $0xa8] sm:$0xff]
    %v379 = vld [vmem:[#allocation2 + $0xb0] sm:$0xff]
    %v380 = vld [vmem:[#allocation2 + $0xb8] sm:$0xff]
    %v381 = vld [vmem:[#allocation2 + $0xc0] sm:$0xff]
    %v382 = vld [vmem:[#allocation2 + $0xc8] sm:$0xff]
    %v383 = vld [vmem:[#allocation2 + $0xd0] sm:$0xff]
    %v384 = vld [vmem:[#allocation2 + $0xd8] sm:$0xff]
    %v385 = vld [vmem:[#allocation2 + $0xe0] sm:$0xff]
    %v386 = vld [vmem:[#allocation2 + $0xe8] sm:$0xff]
    %v387 = vld [vmem:[#allocation2 + $0xf0] sm:$0xff]
    %v388 = vld [vmem:[#allocation2 + $0xf8] sm:$0xff]
    %v389 = vld [vmem:[#allocation2 + $0x100] sm:$0xff]
    %v390 = vld [vmem:[#allocation2 + $0x108] sm:$0xff]
    %v391 = vld [vmem:[#allocation2 + $0x110] sm:$0xff]
    %v392 = vld [vmem:[#allocation2 + $0x118] sm:$0xff]
    %v393 = vld [vmem:[#allocation2 + $0x120] sm:$0xff]
    %v394 = vld [vmem:[#allocation2 + $0x128] sm:$0xff]
    %v395 = vld [vmem:[#allocation2 + $0x130] sm:$0xff]
    %v396 = vld [vmem:[#allocation2 + $0x138] sm:$0xff]
    %v397 = vld [vmem:[#allocation2 + $0x140] sm:$0xff]
    %v398 = vld [vmem:[#allocation2 + $0x148] sm:$0xff]
    %v399 = vld [vmem:[#allocation2 + $0x150] sm:$0xff]
    %v400 = vld [vmem:[#allocation2 + $0x158] sm:$0xff]
    %v401 = vld [vmem:[#allocation2 + $0x160] sm:$0xff]
    %v402 = vld [vmem:[#allocation2 + $0x168] sm:$0xff]
    %v403 = vld [vmem:[#allocation2 + $0x170] sm:$0xff]
    %v404 = vld [vmem:[#allocation2 + $0x178] sm:$0xff]
    %v405 = vld [vmem:[%s4] sm:$0xff]
    %v406 = vld [vmem:[%s4 + $0x8] sm:$0x3f]
    %vm407 = vcmask 48128
    %v409 = vsel %vm407, %v405, 0
    %v412 = vsel %vm407, %v406, 0
    %vm414 = vcmask 1045504
    %v416 = vsel %vm414, %v356, 0
    %418 = vmatprep.subr.mxu0 0.0
    %419 = vmatpush1.msra.mxu0 %v416
    %420 = vmatprep.subr.mxu0 0.0
    %421 = vmatpush1.msra.mxu0 0.0
    %422 = vmatprep.subr.mxu0 0.0
    %423 = vmatpush1.msra.mxu0 0.0
    %424 = vmatprep.subr.mxu0 0.0
    %425 = vmatpush1.msra.mxu0 0.0
    %426 = vmatprep.subr.mxu0 0.0
    %427 = vmatpush1.msra.mxu0 0.0
    %428 = vmatprep.subr.mxu0 0.0
    %429 = vmatpush1.msra.mxu0 0.0
    %430 = vmatprep.subr.mxu0 0.0
    %431 = vmatpush1.msra.mxu0 0.0
    %432 = vmatprep.subr.mxu0 0.0
    %433 = vmatpush1.msra.mxu0 0.0
    %434 = vmatprep.subr.mxu0 0.0
    %435 = vmatpush1.msra.mxu0 0.0
    %436 = vmatprep.subr.mxu0 0.0
    %437 = vmatpush1.msra.mxu0 0.0
    %438 = vmatprep.subr.mxu0 0.0
    %439 = vmatpush1.msra.mxu0 0.0
    %440 = vmatprep.subr.mxu0 0.0
    %441 = vmatpush1.msra.mxu0 0.0
    %442 = vmatprep.subr.mxu0 0.0
    %443 = vmatpush1.msra.mxu0 0.0
    %444 = vmatprep.subr.mxu0 0.0
    %445 = vmatpush1.msra.mxu0 0.0
    %446 = vmatprep.subr.mxu0 0.0
    %447 = vmatpush1.msra.mxu0 0.0
    %448 = vmatprep.subr.mxu0 0.0
    %449 = vmatpush1.msra.mxu0 0.0
    %450 = vmatprep.subr.mxu0 0.0
    %451 = vmatpush1.msra.mxu0 0.0
    %452 = vmatprep.subr.mxu0 0.0
    %453 = vmatpush1.msra.mxu0 0.0
    %454 = vmatprep.subr.mxu0 0.0
    %455 = vmatpush1.msra.mxu0 0.0
    %456 = vmatprep.subr.mxu0 0.0
    %457 = vmatpush1.msra.mxu0 0.0
    %458 = vmatprep.subr.mxu0 0.0
    %459 = vmatpush1.msra.mxu0 0.0
    %460 = vmatprep.subr.mxu0 0.0
    %461 = vmatpush1.msra.mxu0 0.0
    %462 = vmatprep.subr.mxu0 0.0
    %463 = vmatpush1.msra.mxu0 0.0
    %464 = vmatprep.subr.mxu0 0.0
    %465 = vmatpush1.msra.mxu0 0.0
    %466 = vmatprep.subr.mxu0 0.0
    %467 = vmatpush1.msra.mxu0 0.0
    %468 = vmatprep.subr.mxu0 0.0
    %469 = vmatpush1.msra.mxu0 0.0
    %470 = vmatprep.subr.mxu0 0.0
    %471 = vmatpush1.msra.mxu0 0.0
    %472 = vmatprep.subr.mxu0 0.0
    %473 = vmatpush1.msra.mxu0 0.0
    %474 = vmatprep.subr.mxu0 0.0
    %475 = vmatpush1.msra.mxu0 0.0
    %476 = vmatprep.subr.mxu0 0.0
    %477 = vmatpush1.msra.mxu0 0.0
    %478 = vmatprep.subr.mxu0 0.0
    %479 = vmatpush1.msra.mxu0 0.0
    %480 = vmatprep.subr.mxu0 0.0
    %481 = vmatpush1.msra.mxu0 0.0
    %482 = vmatprep.mubr.f32.mxu0 0.0
    %483 = vmatmul.mubr.f32.gmra.mrb[0].mxu0 %v409
    %v484 = vpop.f32.mrb[0].mxu0
    %v485 = vadd.f32 0.0, %v484
    %v486 = vpop.f32.mrb[0].mxu0
    %487 = vmatprep.mubr.f32.mxu0 0.0
    %488 = vmatmul.mubr.f32.gmra.mrb[0].mxu0 %v412
    %v489 = vpop.f32.mrb[0].mxu0
    %v490 = vadd.f32 0.0, %v489
    %v491 = vpop.f32.mrb[0].mxu0
    %492 = vdwg.mxu0
    %s493 = scalar_lea.vmem %s4, 16
    %v494 = vld [vmem:[%s493] sm:$0xff]
    %v495 = vld [vmem:[%s493 + $0x8] sm:$0x3f]
    %v497 = vsel %vm407, %v494, 0
    %v500 = vsel %vm407, %v495, 0
    %502 = vmatprep.subr.mxu0 0.0
    %503 = vmatpush1.msra.mxu0 %v416
    %504 = vmatprep.subr.mxu0 0.0
    %505 = vmatpush1.msra.mxu0 0.0
    %506 = vmatprep.subr.mxu0 0.0
    %507 = vmatpush1.msra.mxu0 0.0
    %508 = vmatprep.subr.mxu0 0.0
    %509 = vmatpush1.msra.mxu0 0.0
    %510 = vmatprep.subr.mxu0 0.0
    %511 = vmatpush1.msra.mxu0 0.0
    %512 = vmatprep.subr.mxu0 0.0
    %513 = vmatpush1.msra.mxu0 0.0
    %514 = vmatprep.subr.mxu0 0.0
    %515 = vmatpush1.msra.mxu0 0.0
    %516 = vmatprep.subr.mxu0 0.0
    %517 = vmatpush1.msra.mxu0 0.0
    %518 = vmatprep.subr.mxu0 0.0
    %519 = vmatpush1.msra.mxu0 0.0
    %520 = vmatprep.subr.mxu0 0.0
    %521 = vmatpush1.msra.mxu0 0.0
    %522 = vmatprep.subr.mxu0 0.0
    %523 = vmatpush1.msra.mxu0 0.0
    %524 = vmatprep.subr.mxu0 0.0
    %525 = vmatpush1.msra.mxu0 0.0
    %526 = vmatprep.subr.mxu0 0.0
    %527 = vmatpush1.msra.mxu0 0.0
    %528 = vmatprep.subr.mxu0 0.0
    %529 = vmatpush1.msra.mxu0 0.0
    %530 = vmatprep.subr.mxu0 0.0
    %531 = vmatpush1.msra.mxu0 0.0
    %532 = vmatprep.subr.mxu0 0.0
    %533 = vmatpush1.msra.mxu0 0.0
    %534 = vmatprep.subr.mxu0 0.0
    %535 = vmatpush1.msra.mxu0 0.0
    %536 = vmatprep.subr.mxu0 0.0
    %537 = vmatpush1.msra.mxu0 0.0
    %538 = vmatprep.subr.mxu0 0.0
    %539 = vmatpush1.msra.mxu0 0.0
    %540 = vmatprep.subr.mxu0 0.0
    %541 = vmatpush1.msra.mxu0 0.0
    %542 = vmatprep.subr.mxu0 0.0
    %543 = vmatpush1.msra.mxu0 0.0
    %544 = vmatprep.subr.mxu0 0.0
    %545 = vmatpush1.msra.mxu0 0.0
    %546 = vmatprep.subr.mxu0 0.0
    %547 = vmatpush1.msra.mxu0 0.0
    %548 = vmatprep.subr.mxu0 0.0
    %549 = vmatpush1.msra.mxu0 0.0
    %550 = vmatprep.subr.mxu0 0.0
    %551 = vmatpush1.msra.mxu0 0.0
    %552 = vmatprep.subr.mxu0 0.0
    %553 = vmatpush1.msra.mxu0 0.0
    %554 = vmatprep.subr.mxu0 0.0
    %555 = vmatpush1.msra.mxu0 0.0
    %556 = vmatprep.subr.mxu0 0.0
    %557 = vmatpush1.msra.mxu0 0.0
    %558 = vmatprep.subr.mxu0 0.0
    %559 = vmatpush1.msra.mxu0 0.0
    %560 = vmatprep.subr.mxu0 0.0
    %561 = vmatpush1.msra.mxu0 0.0
    %562 = vmatprep.subr.mxu0 0.0
    %563 = vmatpush1.msra.mxu0 0.0
    %564 = vmatprep.subr.mxu0 0.0
    %565 = vmatpush1.msra.mxu0 0.0
    %566 = vmatprep.mubr.f32.mxu0 0.0
    %567 = vmatmul.mubr.f32.gmra.mrb[0].mxu0 %v497
    %v568 = vpop.f32.mrb[0].mxu0
    %v569 = vadd.f32 0.0, %v568
    %v570 = vpop.f32.mrb[0].mxu0
    %571 = vmatprep.mubr.f32.mxu0 0.0
    %572 = vmatmul.mubr.f32.gmra.mrb[0].mxu0 %v500
    %v573 = vpop.f32.mrb[0].mxu0
    %v574 = vadd.f32 0.0, %v573
    %v575 = vpop.f32.mrb[0].mxu0
    %576 = vdwg.mxu0
    %s577 = scalar_lea.vmem %s4, 32
    %v578 = vld [vmem:[%s577] sm:$0xff]
    %v579 = vld [vmem:[%s577 + $0x8] sm:$0x3f]
    %v581 = vsel %vm407, %v578, 0
    %v584 = vsel %vm407, %v579, 0
    %586 = vmatprep.subr.mxu0 0.0
    %587 = vmatpush1.msra.mxu0 %v416
    %588 = vmatprep.subr.mxu0 0.0
    %589 = vmatpush1.msra.mxu0 0.0
    %590 = vmatprep.subr.mxu0 0.0
    %591 = vmatpush1.msra.mxu0 0.0
    %592 = vmatprep.subr.mxu0 0.0
    %593 = vmatpush1.msra.mxu0 0.0
    %594 = vmatprep.subr.mxu0 0.0
    %595 = vmatpush1.msra.mxu0 0.0
    %596 = vmatprep.subr.mxu0 0.0
    %597 = vmatpush1.msra.mxu0 0.0
    %598 = vmatprep.subr.mxu0 0.0
    %599 = vmatpush1.msra.mxu0 0.0
    %600 = vmatprep.subr.mxu0 0.0
    %601 = vmatpush1.msra.mxu0 0.0
    %602 = vmatprep.subr.mxu0 0.0
    %603 = vmatpush1.msra.mxu0 0.0
    %604 = vmatprep.subr.mxu0 0.0
    %605 = vmatpush1.msra.mxu0 0.0
    %606 = vmatprep.subr.mxu0 0.0
    %607 = vmatpush1.msra.mxu0 0.0
    %608 = vmatprep.subr.mxu0 0.0
    %609 = vmatpush1.msra.mxu0 0.0
    %610 = vmatprep.subr.mxu0 0.0
    %611 = vmatpush1.msra.mxu0 0.0
    %612 = vmatprep.subr.mxu0 0.0
    %613 = vmatpush1.msra.mxu0 0.0
    %614 = vmatprep.subr.mxu0 0.0
    %615 = vmatpush1.msra.mxu0 0.0
    %616 = vmatprep.subr.mxu0 0.0
    %617 = vmatpush1.msra.mxu0 0.0
    %618 = vmatprep.subr.mxu0 0.0
    %619 = vmatpush1.msra.mxu0 0.0
    %620 = vmatprep.subr.mxu0 0.0
    %621 = vmatpush1.msra.mxu0 0.0
    %622 = vmatprep.subr.mxu0 0.0
    %623 = vmatpush1.msra.mxu0 0.0
    %624 = vmatprep.subr.mxu0 0.0
    %625 = vmatpush1.msra.mxu0 0.0
    %626 = vmatprep.subr.mxu0 0.0
    %627 = vmatpush1.msra.mxu0 0.0
    %628 = vmatprep.subr.mxu0 0.0
    %629 = vmatpush1.msra.mxu0 0.0
    %630 = vmatprep.subr.mxu0 0.0
    %631 = vmatpush1.msra.mxu0 0.0
    %632 = vmatprep.subr.mxu0 0.0
    %633 = vmatpush1.msra.mxu0 0.0
    %634 = vmatprep.subr.mxu0 0.0
    %635 = vmatpush1.msra.mxu0 0.0
    %636 = vmatprep.subr.mxu0 0.0
    %637 = vmatpush1.msra.mxu0 0.0
    %638 = vmatprep.subr.mxu0 0.0
    %639 = vmatpush1.msra.mxu0 0.0
    %640 = vmatprep.subr.mxu0 0.0
    %641 = vmatpush1.msra.mxu0 0.0
    %642 = vmatprep.subr.mxu0 0.0
    %643 = vmatpush1.msra.mxu0 0.0
    %644 = vmatprep.subr.mxu0 0.0
    %645 = vmatpush1.msra.mxu0 0.0
    %646 = vmatprep.subr.mxu0 0.0
    %647 = vmatpush1.msra.mxu0 0.0
    %648 = vmatprep.subr.mxu0 0.0
    %649 = vmatpush1.msra.mxu0 0.0
    %650 = vmatprep.mubr.f32.mxu0 0.0
    %651 = vmatmul.mubr.f32.gmra.mrb[0].mxu0 %v581
    %v652 = vpop.f32.mrb[0].mxu0
    %v653 = vadd.f32 0.0, %v652
    %v654 = vpop.f32.mrb[0].mxu0
    %655 = vmatprep.mubr.f32.mxu0 0.0
    %656 = vmatmul.mubr.f32.gmra.mrb[0].mxu0 %v584
    %v657 = vpop.f32.mrb[0].mxu0
    %v658 = vadd.f32 0.0, %v657
    %v659 = vpop.f32.mrb[0].mxu0
    %660 = vdwg.mxu0
    %661 = vmatprep.subr.mxu0 0.0
    %662 = vmatpush1.msra.mxu0 %v357
    %663 = vmatprep.subr.mxu0 0.0
    %664 = vmatpush1.msra.mxu0 %v358
    %665 = vmatprep.subr.mxu0 0.0
    %666 = vmatpush1.msra.mxu0 %v359
    %667 = vmatprep.subr.mxu0 0.0
    %668 = vmatpush1.msra.mxu0 %v360
    %669 = vmatprep.subr.mxu0 0.0
    %670 = vmatpush1.msra.mxu0 %v361
    %671 = vmatprep.subr.mxu0 0.0
    %672 = vmatpush1.msra.mxu0 %v362
    %673 = vmatprep.subr.mxu0 0.0
    %674 = vmatpush1.msra.mxu0 %v363
    %675 = vmatprep.subr.mxu0 0.0
    %676 = vmatpush1.msra.mxu0 %v364
    %677 = vmatprep.subr.mxu0 0.0
    %678 = vmatpush1.msra.mxu0 %v365
    %679 = vmatprep.subr.mxu0 0.0
    %680 = vmatpush1.msra.mxu0 %v366
    %681 = vmatprep.subr.mxu0 0.0
    %682 = vmatpush1.msra.mxu0 %v367
    %683 = vmatprep.subr.mxu0 0.0
    %684 = vmatpush1.msra.mxu0 %v368
    %685 = vmatprep.subr.mxu0 0.0
    %686 = vmatpush1.msra.mxu0 %v369
    %687 = vmatprep.subr.mxu0 0.0
    %688 = vmatpush1.msra.mxu0 %v370
    %689 = vmatprep.subr.mxu0 0.0
    %690 = vmatpush1.msra.mxu0 %v371
    %691 = vmatprep.subr.mxu0 0.0
    %692 = vmatpush1.msra.mxu0 %v372
    %693 = vmatprep.subr.mxu0 0.0
    %694 = vmatpush1.msra.mxu0 %v373
    %695 = vmatprep.subr.mxu0 0.0
    %696 = vmatpush1.msra.mxu0 %v374
    %697 = vmatprep.subr.mxu0 0.0
    %698 = vmatpush1.msra.mxu0 %v375
    %699 = vmatprep.subr.mxu0 0.0
    %700 = vmatpush1.msra.mxu0 %v376
    %701 = vmatprep.subr.mxu0 0.0
    %702 = vmatpush1.msra.mxu0 %v377
    %703 = vmatprep.subr.mxu0 0.0
    %704 = vmatpush1.msra.mxu0 %v378
    %705 = vmatprep.subr.mxu0 0.0
    %706 = vmatpush1.msra.mxu0 %v379
    %707 = vmatprep.subr.mxu0 0.0
    %708 = vmatpush1.msra.mxu0 %v380
    %709 = vmatprep.subr.mxu0 0.0
    %710 = vmatpush1.msra.mxu0 %v381
    %711 = vmatprep.subr.mxu0 0.0
    %712 = vmatpush1.msra.mxu0 %v382
    %713 = vmatprep.subr.mxu0 0.0
    %714 = vmatpush1.msra.mxu0 %v383
    %715 = vmatprep.subr.mxu0 0.0
    %716 = vmatpush1.msra.mxu0 %v384
    %717 = vmatprep.subr.mxu0 0.0
    %718 = vmatpush1.msra.mxu0 %v385
    %719 = vmatprep.subr.mxu0 0.0
    %720 = vmatpush1.msra.mxu0 %v386
    %721 = vmatprep.subr.mxu0 0.0
    %722 = vmatpush1.msra.mxu0 %v387
    %723 = vmatprep.subr.mxu0 0.0
    %724 = vmatpush1.msra.mxu0 %v388
    %725 = vmatprep.mubr.f32.mxu0 %v569
    %726 = vmatmul.mubr.f32.gmra.mrb[0].mxu0 %v485
    %v727 = vpop.f32.mrb[0].mxu0
    %v728 = vadd.f32 0.0, %v727
    %v729 = vpop.f32.mrb[0].mxu0
    %730 = vmatprep.mubr.f32.mxu0 %v574
    %731 = vmatmul.mubr.f32.gmra.mrb[0].mxu0 %v490
    %v732 = vpop.f32.mrb[0].mxu0
    %v733 = vadd.f32 0.0, %v732
    %v734 = vpop.f32.mrb[0].mxu0
    %735 = vdwg.mxu0
    %736 = vmatprep.subr.mxu0 0.0
    %737 = vmatpush1.msra.mxu0 %v389
    %738 = vmatprep.subr.mxu0 0.0
    %739 = vmatpush1.msra.mxu0 %v390
    %740 = vmatprep.subr.mxu0 0.0
    %741 = vmatpush1.msra.mxu0 %v391
    %742 = vmatprep.subr.mxu0 0.0
    %743 = vmatpush1.msra.mxu0 %v392
    %744 = vmatprep.subr.mxu0 0.0
    %745 = vmatpush1.msra.mxu0 %v393
    %746 = vmatprep.subr.mxu0 0.0
    %747 = vmatpush1.msra.mxu0 %v394
    %748 = vmatprep.subr.mxu0 0.0
    %749 = vmatpush1.msra.mxu0 %v395
    %750 = vmatprep.subr.mxu0 0.0
    %751 = vmatpush1.msra.mxu0 %v396
    %752 = vmatprep.subr.mxu0 0.0
    %753 = vmatpush1.msra.mxu0 %v397
    %754 = vmatprep.subr.mxu0 0.0
    %755 = vmatpush1.msra.mxu0 %v398
    %756 = vmatprep.subr.mxu0 0.0
    %757 = vmatpush1.msra.mxu0 %v399
    %758 = vmatprep.subr.mxu0 0.0
    %759 = vmatpush1.msra.mxu0 %v400
    %760 = vmatprep.subr.mxu0 0.0
    %761 = vmatpush1.msra.mxu0 %v401
    %762 = vmatprep.subr.mxu0 0.0
    %763 = vmatpush1.msra.mxu0 %v402
    %764 = vmatprep.subr.mxu0 0.0
    %765 = vmatpush1.msra.mxu0 %v403
    %766 = vmatprep.subr.mxu0 0.0
    %767 = vmatpush1.msra.mxu0 %v404
    %768 = vmatprep.subr.mxu0 0.0
    %769 = vmatpush1.msra.mxu0 0.0
    %770 = vmatprep.subr.mxu0 0.0
    %771 = vmatpush1.msra.mxu0 0.0
    %772 = vmatprep.subr.mxu0 0.0
    %773 = vmatpush1.msra.mxu0 0.0
    %774 = vmatprep.subr.mxu0 0.0
    %775 = vmatpush1.msra.mxu0 0.0
    %776 = vmatprep.subr.mxu0 0.0
    %777 = vmatpush1.msra.mxu0 0.0
    %778 = vmatprep.subr.mxu0 0.0
    %779 = vmatpush1.msra.mxu0 0.0
    %780 = vmatprep.subr.mxu0 0.0
    %781 = vmatpush1.msra.mxu0 0.0
    %782 = vmatprep.subr.mxu0 0.0
    %783 = vmatpush1.msra.mxu0 0.0
    %784 = vmatprep.subr.mxu0 0.0
    %785 = vmatpush1.msra.mxu0 0.0
    %786 = vmatprep.subr.mxu0 0.0
    %787 = vmatpush1.msra.mxu0 0.0
    %788 = vmatprep.subr.mxu0 0.0
    %789 = vmatpush1.msra.mxu0 0.0
    %790 = vmatprep.subr.mxu0 0.0
    %791 = vmatpush1.msra.mxu0 0.0
    %792 = vmatprep.subr.mxu0 0.0
    %793 = vmatpush1.msra.mxu0 0.0
    %794 = vmatprep.subr.mxu0 0.0
    %795 = vmatpush1.msra.mxu0 0.0
    %796 = vmatprep.subr.mxu0 0.0
    %797 = vmatpush1.msra.mxu0 0.0
    %798 = vmatprep.subr.mxu0 0.0
    %799 = vmatpush1.msra.mxu0 0.0
    %800 = vmatprep.mubr.f32.mxu0 0.0
    %801 = vmatmul.mubr.f32.gmra.mrb[0].mxu0 %v653
    %v802 = vpop.f32.mrb[0].mxu0
    %v803 = vadd.f32 %v728, %v802
    %v804 = vpop.f32.mrb[0].mxu0
    %805 = vmatprep.mubr.f32.mxu0 0.0
    %806 = vmatmul.mubr.f32.gmra.mrb[0].mxu0 %v658
    %v807 = vpop.f32.mrb[0].mxu0
    %v808 = vadd.f32 %v733, %v807
    %v809 = vpop.f32.mrb[0].mxu0
    %810 = vdwg.mxu0
    %v811 = vld [vmem:[%s8] sm:$0xff]
    %v812 = vld [vmem:[%s8 + $0x8] sm:$0xff]
    %v813 = vld [vmem:[%s8 + $0x10] sm:$0xff]
    %v814 = vld [vmem:[%s8 + $0x18] sm:$0xff]
    %v815 = vld [vmem:[%s8 + $0x20] sm:$0xff]
    %v816 = vld [vmem:[%s8 + $0x28] sm:$0xff]
    %v817 = vld [vmem:[%s8 + $0x30] sm:$0xff]
    %v818 = vld [vmem:[%s8 + $0x38] sm:$0xff]
    %v819 = vld [vmem:[%s8 + $0x40] sm:$0xff]
    %v820 = vld [vmem:[%s8 + $0x48] sm:$0xff]
    %v821 = vld [vmem:[%s8 + $0x50] sm:$0xff]
    %v822 = vld [vmem:[%s8 + $0x58] sm:$0xff]
    %v823 = vld [vmem:[%s8 + $0x60] sm:$0xff]
    %v824 = vld [vmem:[%s8 + $0x68] sm:$0xff]
    %v825 = vld [vmem:[%s8 + $0x70] sm:$0xff]
    %v826 = vld [vmem:[%s8 + $0x78] sm:$0xff]
    %v827 = vld [vmem:[%s9] sm:$0xff]
    %v828 = vld [vmem:[%s9 + $0x8] sm:$0xff]
    %v829 = vsel %vm414, %v808, 0.0
    %v830 = vadd.f32 %v803, %v829
    %v831 = vrot.slane %v830, 4
    %v832 = vadd.f32 %v830, %v831
    %v833 = vrot.slane %v832, 2
    %v834 = vadd.f32 %v832, %v833
    %v835 = vrot.slane %v834, 1
    %v836 = vadd.f32 %v834, %v835
    %v837 = vmul.f32 %v803, %v803
    %v838 = vmul.f32 %v808, %v808
    %v839 = vsel %vm414, %v838, 0.0
    %v840 = vadd.f32 %v837, %v839
    %v841 = vrot.slane %v840, 4
    %v842 = vadd.f32 %v840, %v841
    %v843 = vrot.slane %v842, 2
    %v844 = vadd.f32 %v842, %v843
    %v845 = vrot.slane %v844, 1
    %v846 = vadd.f32 %v844, %v845
    %vm847 = vcmask 1040384
    %v848 = vsel %vm847, %v836, %v846
    %849 = vmatprep.subr.mxu0 0.0
    %850 = vmatpush1.msra.mxu0 %v811
    %851 = vmatprep.subr.mxu0 0.0
    %852 = vmatpush1.msra.mxu0 %v812
    %853 = vmatprep.subr.mxu0 0.0
    %854 = vmatpush1.msra.mxu0 %v813
    %855 = vmatprep.subr.mxu0 0.0
    %856 = vmatpush1.msra.mxu0 %v814
    %857 = vmatprep.subr.mxu0 0.0
    %858 = vmatpush1.msra.mxu0 %v815
    %859 = vmatprep.subr.mxu0 0.0
    %860 = vmatpush1.msra.mxu0 %v816
    %861 = vmatprep.subr.mxu0 0.0
    %862 = vmatpush1.msra.mxu0 %v817
    %863 = vmatprep.subr.mxu0 0.0
    %864 = vmatpush1.msra.mxu0 %v818
    %865 = vmatprep.subr.mxu0 0.0
    %866 = vmatpush1.msra.mxu0 %v819
    %867 = vmatprep.subr.mxu0 0.0
    %868 = vmatpush1.msra.mxu0 %v820
    %869 = vmatprep.subr.mxu0 0.0
    %870 = vmatpush1.msra.mxu0 %v821
    %871 = vmatprep.subr.mxu0 0.0
    %872 = vmatpush1.msra.mxu0 %v822
    %873 = vmatprep.subr.mxu0 0.0
    %874 = vmatpush1.msra.mxu0 %v823
    %875 = vmatprep.subr.mxu0 0.0
    %876 = vmatpush1.msra.mxu0 %v824
    %877 = vmatprep.subr.mxu0 0.0
    %878 = vmatpush1.msra.mxu0 %v825
    %879 = vmatprep.subr.mxu0 0.0
    %880 = vmatpush1.msra.mxu0 %v826
    %881 = vmatprep.subr.mxu0 0.0
    %882 = vmatpush1.msra.mxu0 0.0
    %883 = vmatprep.subr.mxu0 0.0
    %884 = vmatpush1.msra.mxu0 0.0
    %885 = vmatprep.subr.mxu0 0.0
    %886 = vmatpush1.msra.mxu0 0.0
    %887 = vmatprep.subr.mxu0 0.0
    %888 = vmatpush1.msra.mxu0 0.0
    %889 = vmatprep.subr.mxu0 0.0
    %890 = vmatpush1.msra.mxu0 0.0
    %891 = vmatprep.subr.mxu0 0.0
    %892 = vmatpush1.msra.mxu0 0.0
    %893 = vmatprep.subr.mxu0 0.0
    %894 = vmatpush1.msra.mxu0 0.0
    %895 = vmatprep.subr.mxu0 0.0
    %896 = vmatpush1.msra.mxu0 0.0
    %897 = vmatprep.subr.mxu0 0.0
    %898 = vmatpush1.msra.mxu0 0.0
    %899 = vmatprep.subr.mxu0 0.0
    %900 = vmatpush1.msra.mxu0 0.0
    %901 = vmatprep.subr.mxu0 0.0
    %902 = vmatpush1.msra.mxu0 0.0
    %903 = vmatprep.subr.mxu0 0.0
    %904 = vmatpush1.msra.mxu0 0.0
    %905 = vmatprep.subr.mxu0 0.0
    %906 = vmatpush1.msra.mxu0 0.0
    %907 = vmatprep.subr.mxu0 0.0
    %908 = vmatpush1.msra.mxu0 0.0
    %909 = vmatprep.subr.mxu0 0.0
    %910 = vmatpush1.msra.mxu0 0.0
    %911 = vmatprep.subr.mxu0 0.0
    %912 = vmatpush1.msra.mxu0 0.0
    %913 = vmatprep.mubr.f32.mxu0 0.0
    %914 = vmatmul.mubr.f32.gmra.mrb[0].mxu0 %v848
    %v915 = vpop.f32.mrb[0].mxu0
    %v916 = vadd.f32 0.0, %v915
    %v917 = vpop.f32.mrb[0].mxu0
    %918 = vdwg.mxu0
    %v919 = vmul.f32 %v916, 0.010204081
    %v920 = vmul.f32 %v919, %v919
    %v922 = vrot.slane %v920, 7
    %v924 = vsub.f32 %v919, %v922
    %v925 = vmax.f32 %v924, 0.0
    %v926 = vadd.f32 %v925, 1e-05
    %v927 = vrsqrt.pop %v926
    %v928 = vmul.f32 %v53, %v927
    %v930 = vrot.slane %v928, 1
    %v932 = vmul.f32 %v919, %v930
    %v934 = vrot.slane %v932, 6
    %v936 = vsub.f32 %v53, %v934
    %v938 = vrot.slane %v936, 1
    %v940 = vsel %vm847, %v930, %v938
    %vm941 = vcmask 130048
    %v943 = vsel %vm941, %v940, 0
    %945 = vmatprep.subr.mxu0 0.0
    %946 = vmatpush1.msra.mxu0 %v827
    %947 = vmatprep.subr.mxu0 0.0
    %948 = vmatpush1.msra.mxu0 %v828
    %949 = vmatprep.subr.mxu0 0.0
    %950 = vmatpush1.msra.mxu0 0.0
    %951 = vmatprep.subr.mxu0 0.0
    %952 = vmatpush1.msra.mxu0 0.0
    %953 = vmatprep.subr.mxu0 0.0
    %954 = vmatpush1.msra.mxu0 0.0
    %955 = vmatprep.subr.mxu0 0.0
    %956 = vmatpush1.msra.mxu0 0.0
    %957 = vmatprep.subr.mxu0 0.0
    %958 = vmatpush1.msra.mxu0 0.0
    %959 = vmatprep.subr.mxu0 0.0
    %960 = vmatpush1.msra.mxu0 0.0
    %961 = vmatprep.subr.mxu0 0.0
    %962 = vmatpush1.msra.mxu0 0.0
    %963 = vmatprep.subr.mxu0 0.0
    %964 = vmatpush1.msra.mxu0 0.0
    %965 = vmatprep.subr.mxu0 0.0
    %966 = vmatpush1.msra.mxu0 0.0
    %967 = vmatprep.subr.mxu0 0.0
    %968 = vmatpush1.msra.mxu0 0.0
    %969 = vmatprep.subr.mxu0 0.0
    %970 = vmatpush1.msra.mxu0 0.0
    %971 = vmatprep.subr.mxu0 0.0
    %972 = vmatpush1.msra.mxu0 0.0
    %973 = vmatprep.subr.mxu0 0.0
    %974 = vmatpush1.msra.mxu0 0.0
    %975 = vmatprep.subr.mxu0 0.0
    %976 = vmatpush1.msra.mxu0 0.0
    %977 = vmatprep.subr.mxu0 0.0
    %978 = vmatpush1.msra.mxu0 0.0
    %979 = vmatprep.subr.mxu0 0.0
    %980 = vmatpush1.msra.mxu0 0.0
    %981 = vmatprep.subr.mxu0 0.0
    %982 = vmatpush1.msra.mxu0 0.0
    %983 = vmatprep.subr.mxu0 0.0
    %984 = vmatpush1.msra.mxu0 0.0
    %985 = vmatprep.subr.mxu0 0.0
    %986 = vmatpush1.msra.mxu0 0.0
    %987 = vmatprep.subr.mxu0 0.0
    %988 = vmatpush1.msra.mxu0 0.0
    %989 = vmatprep.subr.mxu0 0.0
    %990 = vmatpush1.msra.mxu0 0.0
    %991 = vmatprep.subr.mxu0 0.0
    %992 = vmatpush1.msra.mxu0 0.0
    %993 = vmatprep.subr.mxu0 0.0
    %994 = vmatpush1.msra.mxu0 0.0
    %995 = vmatprep.subr.mxu0 0.0
    %996 = vmatpush1.msra.mxu0 0.0
    %997 = vmatprep.subr.mxu0 0.0
    %998 = vmatpush1.msra.mxu0 0.0
    %999 = vmatprep.subr.mxu0 0.0
    %1000 = vmatpush1.msra.mxu0 0.0
    %1001 = vmatprep.subr.mxu0 0.0
    %1002 = vmatpush1.msra.mxu0 0.0
    %1003 = vmatprep.subr.mxu0 0.0
    %1004 = vmatpush1.msra.mxu0 0.0
    %1005 = vmatprep.subr.mxu0 0.0
    %1006 = vmatpush1.msra.mxu0 0.0
    %1007 = vmatprep.subr.mxu0 0.0
    %1008 = vmatpush1.msra.mxu0 0.0
    %1009 = vmatprep.mubr.f32.mxu0 0.0
    %1010 = vmatmul.mubr.f32.gmra.mrb[0].mxu0 %v943
    %v1011 = vpop.f32.mrb[0].mxu0
    %v1012 = vadd.f32 0.0, %v1011
    %v1013 = vpop.f32.mrb[0].mxu0
    %1014 = vdwg.mxu0
    %v1015 = vlaneseq
    %v1016 = vshrl.u32 %v1015, 7
    %v1017 = vsub.s32 0, %v1016
    %v1018 = vrot.slane %v1012, %v1017
    %v1019 = vmul.f32 %v803, %v1018
    %v1020 = vmul.f32 %v808, %v1018
    %v1021 = vlaneseq
    %v1022 = vshrl.u32 %v1021, 7
    %v1023 = vsub.s32 1, %v1022
    %v1024 = vrot.slane %v1012, %v1023
    %v1025 = vadd.f32 %v1019, %v1024
    %v1026 = vadd.f32 %v1020, %v1024
    %v1027 = vmax.f32 %v1025, 0.0
    %v1028 = vmax.f32 %v1026, 0.0
    %s1029 = scalar_lea.vmem [#allocation2], 384
    %v1030 = vld [vmem:[%s1029] sm:$0xff]
    %v1031 = vld [vmem:[%s1029 + $0x8] sm:$0xff]
    %v1032 = vld [vmem:[%s1029 + $0x10] sm:$0xff]
    %v1033 = vld [vmem:[%s1029 + $0x18] sm:$0xff]
    %v1034 = vld [vmem:[%s1029 + $0x20] sm:$0xff]
    %v1035 = vld [vmem:[%s1029 + $0x28] sm:$0xff]
    %v1036 = vld [vmem:[%s1029 + $0x30] sm:$0xff]
    %v1037 = vld [vmem:[%s1029 + $0x38] sm:$0xff]
    %v1038 = vld [vmem:[%s1029 + $0x40] sm:$0xff]
    %v1039 = vld [vmem:[%s1029 + $0x48] sm:$0xff]
    %v1040 = vld [vmem:[%s1029 + $0x50] sm:$0xff]
    %v1041 = vld [vmem:[%s1029 + $0x58] sm:$0xff]
    %v1042 = vld [vmem:[%s1029 + $0x60] sm:$0xff]
    %v1043 = vld [vmem:[%s1029 + $0x68] sm:$0xff]
    %v1044 = vld [vmem:[%s1029 + $0x70] sm:$0xff]
    %v1045 = vld [vmem:[%s1029 + $0x78] sm:$0xff]
    %v1046 = vld [vmem:[%s1029 + $0x80] sm:$0xff]
    %v1047 = vld [vmem:[%s1029 + $0x88] sm:$0xff]
    %v1048 = vld [vmem:[%s1029 + $0x90] sm:$0xff]
    %v1049 = vld [vmem:[%s1029 + $0x98] sm:$0xff]
    %v1050 = vld [vmem:[%s1029 + $0xa0] sm:$0xff]
    %v1051 = vld [vmem:[%s1029 + $0xa8] sm:$0xff]
    %v1052 = vld [vmem:[%s1029 + $0xb0] sm:$0xff]
    %v1053 = vld [vmem:[%s1029 + $0xb8] sm:$0xff]
    %v1054 = vld [vmem:[%s1029 + $0xc0] sm:$0xff]
    %v1055 = vld [vmem:[%s1029 + $0xc8] sm:$0xff]
    %v1056 = vld [vmem:[%s1029 + $0xd0] sm:$0xff]
    %v1057 = vld [vmem:[%s1029 + $0xd8] sm:$0xff]
    %v1058 = vld [vmem:[%s1029 + $0xe0] sm:$0xff]
    %v1059 = vld [vmem:[%s1029 + $0xe8] sm:$0xff]
    %v1060 = vld [vmem:[%s1029 + $0xf0] sm:$0xff]
    %v1061 = vld [vmem:[%s1029 + $0xf8] sm:$0xff]
    %v1062 = vld [vmem:[%s1029 + $0x100] sm:$0xff]
    %v1063 = vld [vmem:[%s1029 + $0x108] sm:$0xff]
    %v1064 = vld [vmem:[%s1029 + $0x110] sm:$0xff]
    %v1065 = vld [vmem:[%s1029 + $0x118] sm:$0xff]
    %v1066 = vld [vmem:[%s1029 + $0x120] sm:$0xff]
    %v1067 = vld [vmem:[%s1029 + $0x128] sm:$0xff]
    %v1068 = vld [vmem:[%s1029 + $0x130] sm:$0xff]
    %v1069 = vld [vmem:[%s1029 + $0x138] sm:$0xff]
    %v1070 = vld [vmem:[%s1029 + $0x140] sm:$0xff]
    %v1071 = vld [vmem:[%s1029 + $0x148] sm:$0xff]
    %v1072 = vld [vmem:[%s1029 + $0x150] sm:$0xff]
    %v1073 = vld [vmem:[%s1029 + $0x158] sm:$0xff]
    %v1074 = vld [vmem:[%s1029 + $0x160] sm:$0xff]
    %v1075 = vld [vmem:[%s1029 + $0x168] sm:$0xff]
    %v1076 = vld [vmem:[%s1029 + $0x170] sm:$0xff]
    %v1077 = vld [vmem:[%s1029 + $0x178] sm:$0xff]
    %v1078 = vld [vmem:[%s5] sm:$0xff]
    %v1079 = vld [vmem:[%s5 + $0x8] sm:$0xff]
    %v1080 = vld [vmem:[%s5 + $0x10] sm:$0xff]
    %v1081 = vld [vmem:[%s5 + $0x18] sm:$0xf]
    %vm1082 = vcmask 113664
    %v1084 = vsel %vm1082, %v1078, 0
    %v1087 = vsel %vm1082, %v1079, 0
    %v1090 = vsel %vm1082, %v1080, 0
    %v1093 = vsel %vm1082, %v1081, 0
    %v1096 = vsel %vm414, %v1028, 0
    %1098 = vmatprep.subr.mxu0 0.0
    %1099 = vmatpush1.msra.mxu0 %v1027
    %1100 = vmatprep.subr.mxu0 0.0
    %1101 = vmatpush1.msra.mxu0 %v1096
    %1102 = vmatprep.subr.mxu0 0.0
    %1103 = vmatpush1.msra.mxu0 0.0
    %1104 = vmatprep.subr.mxu0 0.0
    %1105 = vmatpush1.msra.mxu0 0.0
    %1106 = vmatprep.subr.mxu0 0.0
    %1107 = vmatpush1.msra.mxu0 0.0
    %1108 = vmatprep.subr.mxu0 0.0
    %1109 = vmatpush1.msra.mxu0 0.0
    %1110 = vmatprep.subr.mxu0 0.0
    %1111 = vmatpush1.msra.mxu0 0.0
    %1112 = vmatprep.subr.mxu0 0.0
    %1113 = vmatpush1.msra.mxu0 0.0
    %1114 = vmatprep.subr.mxu0 0.0
    %1115 = vmatpush1.msra.mxu0 0.0
    %1116 = vmatprep.subr.mxu0 0.0
    %1117 = vmatpush1.msra.mxu0 0.0
    %1118 = vmatprep.subr.mxu0 0.0
    %1119 = vmatpush1.msra.mxu0 0.0
    %1120 = vmatprep.subr.mxu0 0.0
    %1121 = vmatpush1.msra.mxu0 0.0
    %1122 = vmatprep.subr.mxu0 0.0
    %1123 = vmatpush1.msra.mxu0 0.0
    %1124 = vmatprep.subr.mxu0 0.0
    %1125 = vmatpush1.msra.mxu0 0.0
    %1126 = vmatprep.subr.mxu0 0.0
    %1127 = vmatpush1.msra.mxu0 0.0
    %1128 = vmatprep.subr.mxu0 0.0
    %1129 = vmatpush1.msra.mxu0 0.0
    %1130 = vmatprep.subr.mxu0 0.0
    %1131 = vmatpush1.msra.mxu0 0.0
    %1132 = vmatprep.subr.mxu0 0.0
    %1133 = vmatpush1.msra.mxu0 0.0
    %1134 = vmatprep.subr.mxu0 0.0
    %1135 = vmatpush1.msra.mxu0 0.0
    %1136 = vmatprep.subr.mxu0 0.0
    %1137 = vmatpush1.msra.mxu0 0.0
    %1138 = vmatprep.subr.mxu0 0.0
    %1139 = vmatpush1.msra.mxu0 0.0
    %1140 = vmatprep.subr.mxu0 0.0
    %1141 = vmatpush1.msra.mxu0 0.0
    %1142 = vmatprep.subr.mxu0 0.0
    %1143 = vmatpush1.msra.mxu0 0.0
    %1144 = vmatprep.subr.mxu0 0.0
    %1145 = vmatpush1.msra.mxu0 0.0
    %1146 = vmatprep.subr.mxu0 0.0
    %1147 = vmatpush1.msra.mxu0 0.0
    %1148 = vmatprep.subr.mxu0 0.0
    %1149 = vmatpush1.msra.mxu0 0.0
    %1150 = vmatprep.subr.mxu0 0.0
    %1151 = vmatpush1.msra.mxu0 0.0
    %1152 = vmatprep.subr.mxu0 0.0
    %1153 = vmatpush1.msra.mxu0 0.0
    %1154 = vmatprep.subr.mxu0 0.0
    %1155 = vmatpush1.msra.mxu0 0.0
    %1156 = vmatprep.subr.mxu0 0.0
    %1157 = vmatpush1.msra.mxu0 0.0
    %1158 = vmatprep.subr.mxu0 0.0
    %1159 = vmatpush1.msra.mxu0 0.0
    %1160 = vmatprep.subr.mxu0 0.0
    %1161 = vmatpush1.msra.mxu0 0.0
    %1162 = vmatprep.mubr.f32.mxu0 0.0
    %1163 = vmatmul.mubr.f32.gmra.mrb[0].mxu0 %v1084
    %v1164 = vpop.f32.mrb[0].mxu0
    %v1165 = vadd.f32 0.0, %v1164
    %v1166 = vpop.f32.mrb[0].mxu0
    %1167 = vmatprep.mubr.f32.mxu0 0.0
    %1168 = vmatmul.mubr.f32.gmra.mrb[0].mxu0 %v1087
    %v1169 = vpop.f32.mrb[0].mxu0
    %v1170 = vadd.f32 0.0, %v1169
    %v1171 = vpop.f32.mrb[0].mxu0
    %1172 = vmatprep.mubr.f32.mxu0 0.0
    %1173 = vmatmul.mubr.f32.gmra.mrb[0].mxu0 %v1090
    %v1174 = vpop.f32.mrb[0].mxu0
    %v1175 = vadd.f32 0.0, %v1174
    %v1176 = vpop.f32.mrb[0].mxu0
    %1177 = vmatprep.mubr.f32.mxu0 0.0
    %1178 = vmatmul.mubr.f32.gmra.mrb[0].mxu0 %v1093
    %v1179 = vpop.f32.mrb[0].mxu0
    %v1180 = vadd.f32 0.0, %v1179
    %v1181 = vpop.f32.mrb[0].mxu0
    %1182 = vdwg.mxu0
    %s1183 = scalar_lea.vmem %s5, 32
    %v1184 = vld [vmem:[%s1183] sm:$0xff]
    %v1185 = vld [vmem:[%s1183 + $0x8] sm:$0xff]
    %v1186 = vld [vmem:[%s1183 + $0x10] sm:$0xff]
    %v1187 = vld [vmem:[%s1183 + $0x18] sm:$0xf]
    %v1189 = vsel %vm1082, %v1184, 0
    %v1192 = vsel %vm1082, %v1185, 0
    %v1195 = vsel %vm1082, %v1186, 0
    %v1198 = vsel %vm1082, %v1187, 0
    %1200 = vmatprep.subr.mxu0 0.0
    %1201 = vmatpush1.msra.mxu0 %v1027
    %1202 = vmatprep.subr.mxu0 0.0
    %1203 = vmatpush1.msra.mxu0 %v1096
    %1204 = vmatprep.subr.mxu0 0.0
    %1205 = vmatpush1.msra.mxu0 0.0
    %1206 = vmatprep.subr.mxu0 0.0
    %1207 = vmatpush1.msra.mxu0 0.0
    %1208 = vmatprep.subr.mxu0 0.0
    %1209 = vmatpush1.msra.mxu0 0.0
    %1210 = vmatprep.subr.mxu0 0.0
    %1211 = vmatpush1.msra.mxu0 0.0
    %1212 = vmatprep.subr.mxu0 0.0
    %1213 = vmatpush1.msra.mxu0 0.0
    %1214 = vmatprep.subr.mxu0 0.0
    %1215 = vmatpush1.msra.mxu0 0.0
    %1216 = vmatprep.subr.mxu0 0.0
    %1217 = vmatpush1.msra.mxu0 0.0
    %1218 = vmatprep.subr.mxu0 0.0
    %1219 = vmatpush1.msra.mxu0 0.0
    %1220 = vmatprep.subr.mxu0 0.0
    %1221 = vmatpush1.msra.mxu0 0.0
    %1222 = vmatprep.subr.mxu0 0.0
    %1223 = vmatpush1.msra.mxu0 0.0
    %1224 = vmatprep.subr.mxu0 0.0
    %1225 = vmatpush1.msra.mxu0 0.0
    %1226 = vmatprep.subr.mxu0 0.0
    %1227 = vmatpush1.msra.mxu0 0.0
    %1228 = vmatprep.subr.mxu0 0.0
    %1229 = vmatpush1.msra.mxu0 0.0
    %1230 = vmatprep.subr.mxu0 0.0
    %1231 = vmatpush1.msra.mxu0 0.0
    %1232 = vmatprep.subr.mxu0 0.0
    %1233 = vmatpush1.msra.mxu0 0.0
    %1234 = vmatprep.subr.mxu0 0.0
    %1235 = vmatpush1.msra.mxu0 0.0
    %1236 = vmatprep.subr.mxu0 0.0
    %1237 = vmatpush1.msra.mxu0 0.0
    %1238 = vmatprep.subr.mxu0 0.0
    %1239 = vmatpush1.msra.mxu0 0.0
    %1240 = vmatprep.subr.mxu0 0.0
    %1241 = vmatpush1.msra.mxu0 0.0
    %1242 = vmatprep.subr.mxu0 0.0
    %1243 = vmatpush1.msra.mxu0 0.0
    %1244 = vmatprep.subr.mxu0 0.0
    %1245 = vmatpush1.msra.mxu0 0.0
    %1246 = vmatprep.subr.mxu0 0.0
    %1247 = vmatpush1.msra.mxu0 0.0
    %1248 = vmatprep.subr.mxu0 0.0
    %1249 = vmatpush1.msra.mxu0 0.0
    %1250 = vmatprep.subr.mxu0 0.0
    %1251 = vmatpush1.msra.mxu0 0.0
    %1252 = vmatprep.subr.mxu0 0.0
    %1253 = vmatpush1.msra.mxu0 0.0
    %1254 = vmatprep.subr.mxu0 0.0
    %1255 = vmatpush1.msra.mxu0 0.0
    %1256 = vmatprep.subr.mxu0 0.0
    %1257 = vmatpush1.msra.mxu0 0.0
    %1258 = vmatprep.subr.mxu0 0.0
    %1259 = vmatpush1.msra.mxu0 0.0
    %1260 = vmatprep.subr.mxu0 0.0
    %1261 = vmatpush1.msra.mxu0 0.0
    %1262 = vmatprep.subr.mxu0 0.0
    %1263 = vmatpush1.msra.mxu0 0.0
    %1264 = vmatprep.mubr.f32.mxu0 0.0
    %1265 = vmatmul.mubr.f32.gmra.mrb[0].mxu0 %v1189
    %v1266 = vpop.f32.mrb[0].mxu0
    %v1267 = vadd.f32 0.0, %v1266
    %v1268 = vpop.f32.mrb[0].mxu0
    %1269 = vmatprep.mubr.f32.mxu0 0.0
    %1270 = vmatmul.mubr.f32.gmra.mrb[0].mxu0 %v1192
    %v1271 = vpop.f32.mrb[0].mxu0
    %v1272 = vadd.f32 0.0, %v1271
    %v1273 = vpop.f32.mrb[0].mxu0
    %1274 = vmatprep.mubr.f32.mxu0 0.0
    %1275 = vmatmul.mubr.f32.gmra.mrb[0].mxu0 %v1195
    %v1276 = vpop.f32.mrb[0].mxu0
    %v1277 = vadd.f32 0.0, %v1276
    %v1278 = vpop.f32.mrb[0].mxu0
    %1279 = vmatprep.mubr.f32.mxu0 0.0
    %1280 = vmatmul.mubr.f32.gmra.mrb[0].mxu0 %v1198
    %v1281 = vpop.f32.mrb[0].mxu0
    %v1282 = vadd.f32 0.0, %v1281
    %v1283 = vpop.f32.mrb[0].mxu0
    %1284 = vdwg.mxu0
    %s1285 = scalar_lea.vmem %s5, 64
    %v1286 = vld [vmem:[%s1285] sm:$0xff]
    %v1287 = vld [vmem:[%s1285 + $0x8] sm:$0xff]
    %v1288 = vld [vmem:[%s1285 + $0x10] sm:$0xff]
    %v1289 = vld [vmem:[%s1285 + $0x18] sm:$0xf]
    %v1291 = vsel %vm1082, %v1286, 0
    %v1294 = vsel %vm1082, %v1287, 0
    %v1297 = vsel %vm1082, %v1288, 0
    %v1300 = vsel %vm1082, %v1289, 0
    %1302 = vmatprep.subr.mxu0 0.0
    %1303 = vmatpush1.msra.mxu0 %v1027
    %1304 = vmatprep.subr.mxu0 0.0
    %1305 = vmatpush1.msra.mxu0 %v1096
    %1306 = vmatprep.subr.mxu0 0.0
    %1307 = vmatpush1.msra.mxu0 0.0
    %1308 = vmatprep.subr.mxu0 0.0
    %1309 = vmatpush1.msra.mxu0 0.0
    %1310 = vmatprep.subr.mxu0 0.0
    %1311 = vmatpush1.msra.mxu0 0.0
    %1312 = vmatprep.subr.mxu0 0.0
    %1313 = vmatpush1.msra.mxu0 0.0
    %1314 = vmatprep.subr.mxu0 0.0
    %1315 = vmatpush1.msra.mxu0 0.0
    %1316 = vmatprep.subr.mxu0 0.0
    %1317 = vmatpush1.msra.mxu0 0.0
    %1318 = vmatprep.subr.mxu0 0.0
    %1319 = vmatpush1.msra.mxu0 0.0
    %1320 = vmatprep.subr.mxu0 0.0
    %1321 = vmatpush1.msra.mxu0 0.0
    %1322 = vmatprep.subr.mxu0 0.0
    %1323 = vmatpush1.msra.mxu0 0.0
    %1324 = vmatprep.subr.mxu0 0.0
    %1325 = vmatpush1.msra.mxu0 0.0
    %1326 = vmatprep.subr.mxu0 0.0
    %1327 = vmatpush1.msra.mxu0 0.0
    %1328 = vmatprep.subr.mxu0 0.0
    %1329 = vmatpush1.msra.mxu0 0.0
    %1330 = vmatprep.subr.mxu0 0.0
    %1331 = vmatpush1.msra.mxu0 0.0
    %1332 = vmatprep.subr.mxu0 0.0
    %1333 = vmatpush1.msra.mxu0 0.0
    %1334 = vmatprep.subr.mxu0 0.0
    %1335 = vmatpush1.msra.mxu0 0.0
    %1336 = vmatprep.subr.mxu0 0.0
    %1337 = vmatpush1.msra.mxu0 0.0
    %1338 = vmatprep.subr.mxu0 0.0
    %1339 = vmatpush1.msra.mxu0 0.0
    %1340 = vmatprep.subr.mxu0 0.0
    %1341 = vmatpush1.msra.mxu0 0.0
    %1342 = vmatprep.subr.mxu0 0.0
    %1343 = vmatpush1.msra.mxu0 0.0
    %1344 = vmatprep.subr.mxu0 0.0
    %1345 = vmatpush1.msra.mxu0 0.0
    %1346 = vmatprep.subr.mxu0 0.0
    %1347 = vmatpush1.msra.mxu0 0.0
    %1348 = vmatprep.subr.mxu0 0.0
    %1349 = vmatpush1.msra.mxu0 0.0
    %1350 = vmatprep.subr.mxu0 0.0
    %1351 = vmatpush1.msra.mxu0 0.0
    %1352 = vmatprep.subr.mxu0 0.0
    %1353 = vmatpush1.msra.mxu0 0.0
    %1354 = vmatprep.subr.mxu0 0.0
    %1355 = vmatpush1.msra.mxu0 0.0
    %1356 = vmatprep.subr.mxu0 0.0
    %1357 = vmatpush1.msra.mxu0 0.0
    %1358 = vmatprep.subr.mxu0 0.0
    %1359 = vmatpush1.msra.mxu0 0.0
    %1360 = vmatprep.subr.mxu0 0.0
    %1361 = vmatpush1.msra.mxu0 0.0
    %1362 = vmatprep.subr.mxu0 0.0
    %1363 = vmatpush1.msra.mxu0 0.0
    %1364 = vmatprep.subr.mxu0 0.0
    %1365 = vmatpush1.msra.mxu0 0.0
    %1366 = vmatprep.mubr.f32.mxu0 0.0
    %1367 = vmatmul.mubr.f32.gmra.mrb[0].mxu0 %v1291
    %v1368 = vpop.f32.mrb[0].mxu0
    %v1369 = vadd.f32 0.0, %v1368
    %v1370 = vpop.f32.mrb[0].mxu0
    %1371 = vmatprep.mubr.f32.mxu0 0.0
    %1372 = vmatmul.mubr.f32.gmra.mrb[0].mxu0 %v1294
    %v1373 = vpop.f32.mrb[0].mxu0
    %v1374 = vadd.f32 0.0, %v1373
    %v1375 = vpop.f32.mrb[0].mxu0
    %1376 = vmatprep.mubr.f32.mxu0 0.0
    %1377 = vmatmul.mubr.f32.gmra.mrb[0].mxu0 %v1297
    %v1378 = vpop.f32.mrb[0].mxu0
    %v1379 = vadd.f32 0.0, %v1378
    %v1380 = vpop.f32.mrb[0].mxu0
    %1381 = vmatprep.mubr.f32.mxu0 0.0
    %1382 = vmatmul.mubr.f32.gmra.mrb[0].mxu0 %v1300
    %v1383 = vpop.f32.mrb[0].mxu0
    %v1384 = vadd.f32 0.0, %v1383
    %v1385 = vpop.f32.mrb[0].mxu0
    %1386 = vdwg.mxu0
    %1387 = vmatprep.subr.mxu0 0.0
    %1388 = vmatpush1.msra.mxu0 %v1030
    %1389 = vmatprep.subr.mxu0 0.0
    %1390 = vmatpush1.msra.mxu0 %v1031
    %1391 = vmatprep.subr.mxu0 0.0
    %1392 = vmatpush1.msra.mxu0 %v1032
    %1393 = vmatprep.subr.mxu0 0.0
    %1394 = vmatpush1.msra.mxu0 %v1033
    %1395 = vmatprep.subr.mxu0 0.0
    %1396 = vmatpush1.msra.mxu0 %v1034
    %1397 = vmatprep.subr.mxu0 0.0
    %1398 = vmatpush1.msra.mxu0 %v1035
    %1399 = vmatprep.subr.mxu0 0.0
    %1400 = vmatpush1.msra.mxu0 %v1036
    %1401 = vmatprep.subr.mxu0 0.0
    %1402 = vmatpush1.msra.mxu0 %v1037
    %1403 = vmatprep.subr.mxu0 0.0
    %1404 = vmatpush1.msra.mxu0 %v1038
    %1405 = vmatprep.subr.mxu0 0.0
    %1406 = vmatpush1.msra.mxu0 %v1039
    %1407 = vmatprep.subr.mxu0 0.0
    %1408 = vmatpush1.msra.mxu0 %v1040
    %1409 = vmatprep.subr.mxu0 0.0
    %1410 = vmatpush1.msra.mxu0 %v1041
    %1411 = vmatprep.subr.mxu0 0.0
    %1412 = vmatpush1.msra.mxu0 %v1042
    %1413 = vmatprep.subr.mxu0 0.0
    %1414 = vmatpush1.msra.mxu0 %v1043
    %1415 = vmatprep.subr.mxu0 0.0
    %1416 = vmatpush1.msra.mxu0 %v1044
    %1417 = vmatprep.subr.mxu0 0.0
    %1418 = vmatpush1.msra.mxu0 %v1045
    %1419 = vmatprep.subr.mxu0 0.0
    %1420 = vmatpush1.msra.mxu0 %v1046
    %1421 = vmatprep.subr.mxu0 0.0
    %1422 = vmatpush1.msra.mxu0 %v1047
    %1423 = vmatprep.subr.mxu0 0.0
    %1424 = vmatpush1.msra.mxu0 %v1048
    %1425 = vmatprep.subr.mxu0 0.0
    %1426 = vmatpush1.msra.mxu0 %v1049
    %1427 = vmatprep.subr.mxu0 0.0
    %1428 = vmatpush1.msra.mxu0 %v1050
    %1429 = vmatprep.subr.mxu0 0.0
    %1430 = vmatpush1.msra.mxu0 %v1051
    %1431 = vmatprep.subr.mxu0 0.0
    %1432 = vmatpush1.msra.mxu0 %v1052
    %1433 = vmatprep.subr.mxu0 0.0
    %1434 = vmatpush1.msra.mxu0 %v1053
    %1435 = vmatprep.subr.mxu0 0.0
    %1436 = vmatpush1.msra.mxu0 %v1054
    %1437 = vmatprep.subr.mxu0 0.0
    %1438 = vmatpush1.msra.mxu0 %v1055
    %1439 = vmatprep.subr.mxu0 0.0
    %1440 = vmatpush1.msra.mxu0 %v1056
    %1441 = vmatprep.subr.mxu0 0.0
    %1442 = vmatpush1.msra.mxu0 %v1057
    %1443 = vmatprep.subr.mxu0 0.0
    %1444 = vmatpush1.msra.mxu0 %v1058
    %1445 = vmatprep.subr.mxu0 0.0
    %1446 = vmatpush1.msra.mxu0 %v1059
    %1447 = vmatprep.subr.mxu0 0.0
    %1448 = vmatpush1.msra.mxu0 %v1060
    %1449 = vmatprep.subr.mxu0 0.0
    %1450 = vmatpush1.msra.mxu0 %v1061
    %1451 = vmatprep.mubr.f32.mxu0 %v1267
    %1452 = vmatmul.mubr.f32.gmra.mrb[0].mxu0 %v1165
    %v1453 = vpop.f32.mrb[0].mxu0
    %v1454 = vadd.f32 0.0, %v1453
    %v1455 = vpop.f32.mrb[0].mxu0
    %1456 = vmatprep.mubr.f32.mxu0 %v1272
    %1457 = vmatmul.mubr.f32.gmra.mrb[0].mxu0 %v1170
    %v1458 = vpop.f32.mrb[0].mxu0
    %v1459 = vadd.f32 0.0, %v1458
    %v1460 = vpop.f32.mrb[0].mxu0
    %1461 = vmatprep.mubr.f32.mxu0 %v1277
    %1462 = vmatmul.mubr.f32.gmra.mrb[0].mxu0 %v1175
    %v1463 = vpop.f32.mrb[0].mxu0
    %v1464 = vadd.f32 0.0, %v1463
    %v1465 = vpop.f32.mrb[0].mxu0
    %1466 = vmatprep.mubr.f32.mxu0 %v1282
    %1467 = vmatmul.mubr.f32.gmra.mrb[0].mxu0 %v1180
    %v1468 = vpop.f32.mrb[0].mxu0
    %v1469 = vadd.f32 0.0, %v1468
    %v1470 = vpop.f32.mrb[0].mxu0
    %1471 = vdwg.mxu0
    %1472 = vmatprep.subr.mxu0 0.0
    %1473 = vmatpush1.msra.mxu0 %v1062
    %1474 = vmatprep.subr.mxu0 0.0
    %1475 = vmatpush1.msra.mxu0 %v1063
    %1476 = vmatprep.subr.mxu0 0.0
    %1477 = vmatpush1.msra.mxu0 %v1064
    %1478 = vmatprep.subr.mxu0 0.0
    %1479 = vmatpush1.msra.mxu0 %v1065
    %1480 = vmatprep.subr.mxu0 0.0
    %1481 = vmatpush1.msra.mxu0 %v1066
    %1482 = vmatprep.subr.mxu0 0.0
    %1483 = vmatpush1.msra.mxu0 %v1067
    %1484 = vmatprep.subr.mxu0 0.0
    %1485 = vmatpush1.msra.mxu0 %v1068
    %1486 = vmatprep.subr.mxu0 0.0
    %1487 = vmatpush1.msra.mxu0 %v1069
    %1488 = vmatprep.subr.mxu0 0.0
    %1489 = vmatpush1.msra.mxu0 %v1070
    %1490 = vmatprep.subr.mxu0 0.0
    %1491 = vmatpush1.msra.mxu0 %v1071
    %1492 = vmatprep.subr.mxu0 0.0
    %1493 = vmatpush1.msra.mxu0 %v1072
    %1494 = vmatprep.subr.mxu0 0.0
    %1495 = vmatpush1.msra.mxu0 %v1073
    %1496 = vmatprep.subr.mxu0 0.0
    %1497 = vmatpush1.msra.mxu0 %v1074
    %1498 = vmatprep.subr.mxu0 0.0
    %1499 = vmatpush1.msra.mxu0 %v1075
    %1500 = vmatprep.subr.mxu0 0.0
    %1501 = vmatpush1.msra.mxu0 %v1076
    %1502 = vmatprep.subr.mxu0 0.0
    %1503 = vmatpush1.msra.mxu0 %v1077
    %1504 = vmatprep.subr.mxu0 0.0
    %1505 = vmatpush1.msra.mxu0 0.0
    %1506 = vmatprep.subr.mxu0 0.0
    %1507 = vmatpush1.msra.mxu0 0.0
    %1508 = vmatprep.subr.mxu0 0.0
    %1509 = vmatpush1.msra.mxu0 0.0
    %1510 = vmatprep.subr.mxu0 0.0
    %1511 = vmatpush1.msra.mxu0 0.0
    %1512 = vmatprep.subr.mxu0 0.0
    %1513 = vmatpush1.msra.mxu0 0.0
    %1514 = vmatprep.subr.mxu0 0.0
    %1515 = vmatpush1.msra.mxu0 0.0
    %1516 = vmatprep.subr.mxu0 0.0
    %1517 = vmatpush1.msra.mxu0 0.0
    %1518 = vmatprep.subr.mxu0 0.0
    %1519 = vmatpush1.msra.mxu0 0.0
    %1520 = vmatprep.subr.mxu0 0.0
    %1521 = vmatpush1.msra.mxu0 0.0
    %1522 = vmatprep.subr.mxu0 0.0
    %1523 = vmatpush1.msra.mxu0 0.0
    %1524 = vmatprep.subr.mxu0 0.0
    %1525 = vmatpush1.msra.mxu0 0.0
    %1526 = vmatprep.subr.mxu0 0.0
    %1527 = vmatpush1.msra.mxu0 0.0
    %1528 = vmatprep.subr.mxu0 0.0
    %1529 = vmatpush1.msra.mxu0 0.0
    %1530 = vmatprep.subr.mxu0 0.0
    %1531 = vmatpush1.msra.mxu0 0.0
    %1532 = vmatprep.subr.mxu0 0.0
    %1533 = vmatpush1.msra.mxu0 0.0
    %1534 = vmatprep.subr.mxu0 0.0
    %1535 = vmatpush1.msra.mxu0 0.0
    %1536 = vmatprep.mubr.f32.mxu0 0.0
    %1537 = vmatmul.mubr.f32.gmra.mrb[0].mxu0 %v1369
    %v1538 = vpop.f32.mrb[0].mxu0
    %v1539 = vadd.f32 %v1454, %v1538
    %v1540 = vpop.f32.mrb[0].mxu0
    %1541 = vmatprep.mubr.f32.mxu0 0.0
    %1542 = vmatmul.mubr.f32.gmra.mrb[0].mxu0 %v1374
    %v1543 = vpop.f32.mrb[0].mxu0
    %v1544 = vadd.f32 %v1459, %v1543
    %v1545 = vpop.f32.mrb[0].mxu0
    %1546 = vmatprep.mubr.f32.mxu0 0.0
    %1547 = vmatmul.mubr.f32.gmra.mrb[0].mxu0 %v1379
    %v1548 = vpop.f32.mrb[0].mxu0
    %v1549 = vadd.f32 %v1464, %v1548
    %v1550 = vpop.f32.mrb[0].mxu0
    %1551 = vmatprep.mubr.f32.mxu0 0.0
    %1552 = vmatmul.mubr.f32.gmra.mrb[0].mxu0 %v1384
    %v1553 = vpop.f32.mrb[0].mxu0
    %v1554 = vadd.f32 %v1469, %v1553
    %v1555 = vpop.f32.mrb[0].mxu0
    %1556 = vdwg.mxu0
    %v1557 = vld [vmem:[%s9 + $0x10] sm:$0xff]
    %v1558 = vadd.f32 %v1539, %v1544
    %v1559 = vadd.f32 %v1558, %v1549
    %v1560 = vsel %vm64, %v1554, 0.0
    %v1561 = vadd.f32 %v1559, %v1560
    %v1562 = vrot.slane %v1561, 4
    %v1563 = vadd.f32 %v1561, %v1562
    %v1564 = vrot.slane %v1563, 2
    %v1565 = vadd.f32 %v1563, %v1564
    %v1566 = vrot.slane %v1565, 1
    %v1567 = vadd.f32 %v1565, %v1566
    %v1568 = vmul.f32 %v1539, %v1539
    %v1569 = vmul.f32 %v1544, %v1544
    %v1570 = vmul.f32 %v1549, %v1549
    %v1571 = vmul.f32 %v1554, %v1554
    %v1572 = vadd.f32 %v1568, %v1569
    %v1573 = vadd.f32 %v1572, %v1570
    %v1574 = vsel %vm64, %v1571, 0.0
    %v1575 = vadd.f32 %v1573, %v1574
    %v1576 = vrot.slane %v1575, 4
    %v1577 = vadd.f32 %v1575, %v1576
    %v1578 = vrot.slane %v1577, 2
    %v1579 = vadd.f32 %v1577, %v1578
    %v1580 = vrot.slane %v1579, 1
    %v1581 = vadd.f32 %v1579, %v1580
    %v1582 = vsel %vm847, %v1567, %v1581
    %1599 = vrot.lane.b32.xlu0 %v811, 112
    %v1600 = vpop.permute.xlu0 %1599
    %1601 = vrot.lane.b32.xlu0 %v812, 112
    %v1602 = vpop.permute.xlu0 %1601
    %1603 = vrot.lane.b32.xlu0 %v813, 112
    %v1604 = vpop.permute.xlu0 %1603
    %1605 = vrot.lane.b32.xlu0 %v814, 112
    %v1606 = vpop.permute.xlu0 %1605
    %1607 = vrot.lane.b32.xlu0 %v815, 112
    %v1608 = vpop.permute.xlu0 %1607
    %1609 = vrot.lane.b32.xlu0 %v816, 112
    %v1610 = vpop.permute.xlu0 %1609
    %1611 = vrot.lane.b32.xlu0 %v817, 112
    %v1612 = vpop.permute.xlu0 %1611
    %1613 = vrot.lane.b32.xlu0 %v818, 112
    %v1614 = vpop.permute.xlu0 %1613
    %1615 = vrot.lane.b32.xlu0 %v819, 112
    %v1616 = vpop.permute.xlu0 %1615
    %1617 = vrot.lane.b32.xlu0 %v820, 112
    %v1618 = vpop.permute.xlu0 %1617
    %1619 = vrot.lane.b32.xlu0 %v821, 112
    %v1620 = vpop.permute.xlu0 %1619
    %1621 = vrot.lane.b32.xlu0 %v822, 112
    %v1622 = vpop.permute.xlu0 %1621
    %1623 = vrot.lane.b32.xlu0 %v823, 112
    %v1624 = vpop.permute.xlu0 %1623
    %1625 = vrot.lane.b32.xlu0 %v824, 112
    %v1626 = vpop.permute.xlu0 %1625
    %1627 = vrot.lane.b32.xlu0 %v825, 112
    %v1628 = vpop.permute.xlu0 %1627
    %1629 = vrot.lane.b32.xlu0 %v826, 112
    %v1630 = vpop.permute.xlu0 %1629
    %1647 = vmatprep.subr.mxu0 0.0
    %1648 = vmatpush1.msra.mxu0 %v1600
    %1649 = vmatprep.subr.mxu0 0.0
    %1650 = vmatpush1.msra.mxu0 %v1602
    %1651 = vmatprep.subr.mxu0 0.0
    %1652 = vmatpush1.msra.mxu0 %v1604
    %1653 = vmatprep.subr.mxu0 0.0
    %1654 = vmatpush1.msra.mxu0 %v1606
    %1655 = vmatprep.subr.mxu0 0.0
    %1656 = vmatpush1.msra.mxu0 %v1608
    %1657 = vmatprep.subr.mxu0 0.0
    %1658 = vmatpush1.msra.mxu0 %v1610
    %1659 = vmatprep.subr.mxu0 0.0
    %1660 = vmatpush1.msra.mxu0 %v1612
    %1661 = vmatprep.subr.mxu0 0.0
    %1662 = vmatpush1.msra.mxu0 %v1614
    %1663 = vmatprep.subr.mxu0 0.0
    %1664 = vmatpush1.msra.mxu0 %v1616
    %1665 = vmatprep.subr.mxu0 0.0
    %1666 = vmatpush1.msra.mxu0 %v1618
    %1667 = vmatprep.subr.mxu0 0.0
    %1668 = vmatpush1.msra.mxu0 %v1620
    %1669 = vmatprep.subr.mxu0 0.0
    %1670 = vmatpush1.msra.mxu0 %v1622
    %1671 = vmatprep.subr.mxu0 0.0
    %1672 = vmatpush1.msra.mxu0 %v1624
    %1673 = vmatprep.subr.mxu0 0.0
    %1674 = vmatpush1.msra.mxu0 %v1626
    %1675 = vmatprep.subr.mxu0 0.0
    %1676 = vmatpush1.msra.mxu0 %v1628
    %1677 = vmatprep.subr.mxu0 0.0
    %1678 = vmatpush1.msra.mxu0 %v1630
    %1679 = vmatprep.subr.mxu0 0.0
    %1680 = vmatpush1.msra.mxu0 0.0
    %1681 = vmatprep.subr.mxu0 0.0
    %1682 = vmatpush1.msra.mxu0 0.0
    %1683 = vmatprep.subr.mxu0 0.0
    %1684 = vmatpush1.msra.mxu0 0.0
    %1685 = vmatprep.subr.mxu0 0.0
    %1686 = vmatpush1.msra.mxu0 0.0
    %1687 = vmatprep.subr.mxu0 0.0
    %1688 = vmatpush1.msra.mxu0 0.0
    %1689 = vmatprep.subr.mxu0 0.0
    %1690 = vmatpush1.msra.mxu0 0.0
    %1691 = vmatprep.subr.mxu0 0.0
    %1692 = vmatpush1.msra.mxu0 0.0
    %1693 = vmatprep.subr.mxu0 0.0
    %1694 = vmatpush1.msra.mxu0 0.0
    %1695 = vmatprep.subr.mxu0 0.0
    %1696 = vmatpush1.msra.mxu0 0.0
    %1697 = vmatprep.subr.mxu0 0.0
    %1698 = vmatpush1.msra.mxu0 0.0
    %1699 = vmatprep.subr.mxu0 0.0
    %1700 = vmatpush1.msra.mxu0 0.0
    %1701 = vmatprep.subr.mxu0 0.0
    %1702 = vmatpush1.msra.mxu0 0.0
    %1703 = vmatprep.subr.mxu0 0.0
    %1704 = vmatpush1.msra.mxu0 0.0
    %1705 = vmatprep.subr.mxu0 0.0
    %1706 = vmatpush1.msra.mxu0 0.0
    %1707 = vmatprep.subr.mxu0 0.0
    %1708 = vmatpush1.msra.mxu0 0.0
    %1709 = vmatprep.subr.mxu0 0.0
    %1710 = vmatpush1.msra.mxu0 0.0
    %1711 = vmatprep.mubr.f32.mxu0 0.0
    %1712 = vmatmul.mubr.f32.gmra.mrb[0].mxu0 %v1582
    %v1713 = vpop.f32.mrb[0].mxu0
    %v1714 = vadd.f32 0.0, %v1713
    %v1715 = vpop.f32.mrb[0].mxu0
    %1716 = vdwg.mxu0
    %v1717 = vmul.f32 %v1714, 0.0025510204
    %v1718 = vmul.f32 %v1717, %v1717
    %v1720 = vrot.slane %v1718, 7
    %v1722 = vsub.f32 %v1717, %v1720
    %v1723 = vmax.f32 %v1722, 0.0
    %v1724 = vadd.f32 %v1723, 1e-05
    %v1725 = vrsqrt.pop %v1724
    %v1727 = vrot.slane %v1725, 6
    %v1729 = vmul.f32 %v53, %v1727
    %v1731 = vrot.slane %v1729, 3
    %v1733 = vmul.f32 %v1717, %v1731
    %v1735 = vrot.slane %v1733, 4
    %v1737 = vsub.f32 %v53, %v1735
    %v1739 = vrot.slane %v1737, 3
    %v1741 = vsel %vm847, %v1731, %v1739
    %vm1742 = vcmask 64512
    %v1744 = vsel %vm1742, %v1741, 0
    %1746 = vmatprep.subr.mxu0 0.0
    %1747 = vmatpush1.msra.mxu0 %v1557
    %1748 = vmatprep.subr.mxu0 0.0
    %1749 = vmatpush1.msra.mxu0 0.0
    %1750 = vmatprep.subr.mxu0 0.0
    %1751 = vmatpush1.msra.mxu0 0.0
    %1752 = vmatprep.subr.mxu0 0.0
    %1753 = vmatpush1.msra.mxu0 0.0
    %1754 = vmatprep.subr.mxu0 0.0
    %1755 = vmatpush1.msra.mxu0 0.0
    %1756 = vmatprep.subr.mxu0 0.0
    %1757 = vmatpush1.msra.mxu0 0.0
    %1758 = vmatprep.subr.mxu0 0.0
    %1759 = vmatpush1.msra.mxu0 0.0
    %1760 = vmatprep.subr.mxu0 0.0
    %1761 = vmatpush1.msra.mxu0 0.0
    %1762 = vmatprep.subr.mxu0 0.0
    %1763 = vmatpush1.msra.mxu0 0.0
    %1764 = vmatprep.subr.mxu0 0.0
    %1765 = vmatpush1.msra.mxu0 0.0
    %1766 = vmatprep.subr.mxu0 0.0
    %1767 = vmatpush1.msra.mxu0 0.0
    %1768 = vmatprep.subr.mxu0 0.0
    %1769 = vmatpush1.msra.mxu0 0.0
    %1770 = vmatprep.subr.mxu0 0.0
    %1771 = vmatpush1.msra.mxu0 0.0
    %1772 = vmatprep.subr.mxu0 0.0
    %1773 = vmatpush1.msra.mxu0 0.0
    %1774 = vmatprep.subr.mxu0 0.0
    %1775 = vmatpush1.msra.mxu0 0.0
    %1776 = vmatprep.subr.mxu0 0.0
    %1777 = vmatpush1.msra.mxu0 0.0
    %1778 = vmatprep.subr.mxu0 0.0
    %1779 = vmatpush1.msra.mxu0 0.0
    %1780 = vmatprep.subr.mxu0 0.0
    %1781 = vmatpush1.msra.mxu0 0.0
    %1782 = vmatprep.subr.mxu0 0.0
    %1783 = vmatpush1.msra.mxu0 0.0
    %1784 = vmatprep.subr.mxu0 0.0
    %1785 = vmatpush1.msra.mxu0 0.0
    %1786 = vmatprep.subr.mxu0 0.0
    %1787 = vmatpush1.msra.mxu0 0.0
    %1788 = vmatprep.subr.mxu0 0.0
    %1789 = vmatpush1.msra.mxu0 0.0
    %1790 = vmatprep.subr.mxu0 0.0
    %1791 = vmatpush1.msra.mxu0 0.0
    %1792 = vmatprep.subr.mxu0 0.0
    %1793 = vmatpush1.msra.mxu0 0.0
    %1794 = vmatprep.subr.mxu0 0.0
    %1795 = vmatpush1.msra.mxu0 0.0
    %1796 = vmatprep.subr.mxu0 0.0
    %1797 = vmatpush1.msra.mxu0 0.0
    %1798 = vmatprep.subr.mxu0 0.0
    %1799 = vmatpush1.msra.mxu0 0.0
    %1800 = vmatprep.subr.mxu0 0.0
    %1801 = vmatpush1.msra.mxu0 0.0
    %1802 = vmatprep.subr.mxu0 0.0
    %1803 = vmatpush1.msra.mxu0 0.0
    %1804 = vmatprep.subr.mxu0 0.0
    %1805 = vmatpush1.msra.mxu0 0.0
    %1806 = vmatprep.subr.mxu0 0.0
    %1807 = vmatpush1.msra.mxu0 0.0
    %1808 = vmatprep.subr.mxu0 0.0
    %1809 = vmatpush1.msra.mxu0 0.0
    %1810 = vmatprep.mubr.f32.mxu0 0.0
    %1811 = vmatmul.mubr.f32.gmra.mrb[0].mxu0 %v1744
    %v1812 = vpop.f32.mrb[0].mxu0
    %v1813 = vadd.f32 0.0, %v1812
    %v1814 = vpop.f32.mrb[0].mxu0
    %1815 = vdwg.mxu0
    %v1816 = vlaneseq
    %v1817 = vshrl.u32 %v1816, 7
    %v1818 = vsub.s32 0, %v1817
    %v1819 = vrot.slane %v1813, %v1818
    %v1820 = vmul.f32 %v1539, %v1819
    %v1821 = vmul.f32 %v1544, %v1819
    %v1822 = vmul.f32 %v1549, %v1819
    %v1823 = vmul.f32 %v1554, %v1819
    %v1824 = vlaneseq
    %v1825 = vshrl.u32 %v1824, 7
    %v1826 = vsub.s32 1, %v1825
    %v1827 = vrot.slane %v1813, %v1826
    %v1828 = vadd.f32 %v1820, %v1827
    %v1829 = vadd.f32 %v1821, %v1827
    %v1830 = vadd.f32 %v1822, %v1827
    %v1831 = vadd.f32 %v1823, %v1827
    %v1832 = vmax.f32 %v1828, 0.0
    %v1833 = vmax.f32 %v1829, 0.0
    %v1834 = vmax.f32 %v1830, 0.0
    %v1835 = vmax.f32 %v1831, 0.0
    %s1836 = scalar_lea.vmem [#allocation2], 768
    %v1837 = vld [vmem:[%s1836] sm:$0xff]
    %v1838 = vld [vmem:[%s1836 + $0x8] sm:$0xff]
    %v1839 = vld [vmem:[%s1836 + $0x10] sm:$0xff]
    %v1840 = vld [vmem:[%s1836 + $0x18] sm:$0xff]
    %v1841 = vld [vmem:[%s1836 + $0x20] sm:$0xff]
    %v1842 = vld [vmem:[%s1836 + $0x28] sm:$0xff]
    %v1843 = vld [vmem:[%s1836 + $0x30] sm:$0xff]
    %v1844 = vld [vmem:[%s1836 + $0x38] sm:$0xff]
    %v1845 = vld [vmem:[%s1836 + $0x40] sm:$0xff]
    %v1846 = vld [vmem:[%s1836 + $0x48] sm:$0xff]
    %v1847 = vld [vmem:[%s1836 + $0x50] sm:$0xff]
    %v1848 = vld [vmem:[%s1836 + $0x58] sm:$0xff]
    %v1849 = vld [vmem:[%s1836 + $0x60] sm:$0xff]
    %v1850 = vld [vmem:[%s1836 + $0x68] sm:$0xff]
    %v1851 = vld [vmem:[%s1836 + $0x70] sm:$0xff]
    %v1852 = vld [vmem:[%s1836 + $0x78] sm:$0xff]
    %v1853 = vld [vmem:[%s1836 + $0x80] sm:$0xff]
    %v1854 = vld [vmem:[%s1836 + $0x88] sm:$0xff]
    %v1855 = vld [vmem:[%s1836 + $0x90] sm:$0xff]
    %v1856 = vld [vmem:[%s1836 + $0x98] sm:$0xff]
    %v1857 = vld [vmem:[%s1836 + $0xa0] sm:$0xff]
    %v1858 = vld [vmem:[%s1836 + $0xa8] sm:$0xff]
    %v1859 = vld [vmem:[%s1836 + $0xb0] sm:$0xff]
    %v1860 = vld [vmem:[%s1836 + $0xb8] sm:$0xff]
    %v1861 = vld [vmem:[%s1836 + $0xc0] sm:$0xff]
    %v1862 = vld [vmem:[%s1836 + $0xc8] sm:$0xff]
    %v1863 = vld [vmem:[%s1836 + $0xd0] sm:$0xff]
    %v1864 = vld [vmem:[%s1836 + $0xd8] sm:$0xff]
    %v1865 = vld [vmem:[%s1836 + $0xe0] sm:$0xff]
    %v1866 = vld [vmem:[%s1836 + $0xe8] sm:$0xff]
    %v1867 = vld [vmem:[%s1836 + $0xf0] sm:$0xff]
    %v1868 = vld [vmem:[%s1836 + $0xf8] sm:$0xff]
    %v1869 = vld [vmem:[%s1836 + $0x100] sm:$0xff]
    %v1870 = vld [vmem:[%s1836 + $0x108] sm:$0xff]
    %v1871 = vld [vmem:[%s1836 + $0x110] sm:$0xff]
    %v1872 = vld [vmem:[%s1836 + $0x118] sm:$0xff]
    %v1873 = vld [vmem:[%s1836 + $0x120] sm:$0xff]
    %v1874 = vld [vmem:[%s1836 + $0x128] sm:$0xff]
    %v1875 = vld [vmem:[%s1836 + $0x130] sm:$0xff]
    %v1876 = vld [vmem:[%s1836 + $0x138] sm:$0xff]
    %v1877 = vld [vmem:[%s1836 + $0x140] sm:$0xff]
    %v1878 = vld [vmem:[%s1836 + $0x148] sm:$0xff]
    %v1879 = vld [vmem:[%s1836 + $0x150] sm:$0xff]
    %v1880 = vld [vmem:[%s1836 + $0x158] sm:$0xff]
    %v1881 = vld [vmem:[%s1836 + $0x160] sm:$0xff]
    %v1882 = vld [vmem:[%s1836 + $0x168] sm:$0xff]
    %v1883 = vld [vmem:[%s1836 + $0x170] sm:$0xff]
    %v1884 = vld [vmem:[%s1836 + $0x178] sm:$0xff]
    %v1885 = vld [vmem:[%s6] sm:$0xff]
    %v1886 = vld [vmem:[%s6 + $0x8] sm:$0xff]
    %v1887 = vld [vmem:[%s6 + $0x10] sm:$0xff]
    %v1888 = vld [vmem:[%s6 + $0x18] sm:$0xff]
    %v1889 = vld [vmem:[%s6 + $0x20] sm:$0xff]
    %v1890 = vld [vmem:[%s6 + $0x28] sm:$0xff]
    %v1891 = vld [vmem:[%s6 + $0x30] sm:$0xff]
    %vm1892 = vcmask 228352
    %v1894 = vsel %vm1892, %v1885, 0
    %v1897 = vsel %vm1892, %v1886, 0
    %v1900 = vsel %vm1892, %v1887, 0
    %v1903 = vsel %vm1892, %v1888, 0
    %v1906 = vsel %vm1892, %v1889, 0
    %v1909 = vsel %vm1892, %v1890, 0
    %v1912 = vsel %vm1892, %v1891, 0
    %v1915 = vsel %vm64, %v1835, 0
    %1917 = vmatprep.subr.mxu0 0.0
    %1918 = vmatpush1.msra.mxu0 %v1832
    %1919 = vmatprep.subr.mxu0 0.0
    %1920 = vmatpush1.msra.mxu0 %v1833
    %1921 = vmatprep.subr.mxu0 0.0
    %1922 = vmatpush1.msra.mxu0 %v1834
    %1923 = vmatprep.subr.mxu0 0.0
    %1924 = vmatpush1.msra.mxu0 %v1915
    %1925 = vmatprep.subr.mxu0 0.0
    %1926 = vmatpush1.msra.mxu0 0.0
    %1927 = vmatprep.subr.mxu0 0.0
    %1928 = vmatpush1.msra.mxu0 0.0
    %1929 = vmatprep.subr.mxu0 0.0
    %1930 = vmatpush1.msra.mxu0 0.0
    %1931 = vmatprep.subr.mxu0 0.0
    %1932 = vmatpush1.msra.mxu0 0.0
    %1933 = vmatprep.subr.mxu0 0.0
    %1934 = vmatpush1.msra.mxu0 0.0
    %1935 = vmatprep.subr.mxu0 0.0
    %1936 = vmatpush1.msra.mxu0 0.0
    %1937 = vmatprep.subr.mxu0 0.0
    %1938 = vmatpush1.msra.mxu0 0.0
    %1939 = vmatprep.subr.mxu0 0.0
    %1940 = vmatpush1.msra.mxu0 0.0
    %1941 = vmatprep.subr.mxu0 0.0
    %1942 = vmatpush1.msra.mxu0 0.0
    %1943 = vmatprep.subr.mxu0 0.0
    %1944 = vmatpush1.msra.mxu0 0.0
    %1945 = vmatprep.subr.mxu0 0.0
    %1946 = vmatpush1.msra.mxu0 0.0
    %1947 = vmatprep.subr.mxu0 0.0
    %1948 = vmatpush1.msra.mxu0 0.0
    %1949 = vmatprep.subr.mxu0 0.0
    %1950 = vmatpush1.msra.mxu0 0.0
    %1951 = vmatprep.subr.mxu0 0.0
    %1952 = vmatpush1.msra.mxu0 0.0
    %1953 = vmatprep.subr.mxu0 0.0
    %1954 = vmatpush1.msra.mxu0 0.0
    %1955 = vmatprep.subr.mxu0 0.0
    %1956 = vmatpush1.msra.mxu0 0.0
    %1957 = vmatprep.subr.mxu0 0.0
    %1958 = vmatpush1.msra.mxu0 0.0
    %1959 = vmatprep.subr.mxu0 0.0
    %1960 = vmatpush1.msra.mxu0 0.0
    %1961 = vmatprep.subr.mxu0 0.0
    %1962 = vmatpush1.msra.mxu0 0.0
    %1963 = vmatprep.subr.mxu0 0.0
    %1964 = vmatpush1.msra.mxu0 0.0
    %1965 = vmatprep.subr.mxu0 0.0
    %1966 = vmatpush1.msra.mxu0 0.0
    %1967 = vmatprep.subr.mxu0 0.0
    %1968 = vmatpush1.msra.mxu0 0.0
    %1969 = vmatprep.subr.mxu0 0.0
    %1970 = vmatpush1.msra.mxu0 0.0
    %1971 = vmatprep.subr.mxu0 0.0
    %1972 = vmatpush1.msra.mxu0 0.0
    %1973 = vmatprep.subr.mxu0 0.0
    %1974 = vmatpush1.msra.mxu0 0.0
    %1975 = vmatprep.subr.mxu0 0.0
    %1976 = vmatpush1.msra.mxu0 0.0
    %1977 = vmatprep.subr.mxu0 0.0
    %1978 = vmatpush1.msra.mxu0 0.0
    %1979 = vmatprep.subr.mxu0 0.0
    %1980 = vmatpush1.msra.mxu0 0.0
    %1981 = vmatprep.mubr.f32.mxu0 0.0
    %1982 = vmatmul.mubr.f32.gmra.mrb[0].mxu0 %v1894
    %v1983 = vpop.f32.mrb[0].mxu0
    %v1984 = vadd.f32 0.0, %v1983
    %v1985 = vpop.f32.mrb[0].mxu0
    %1986 = vmatprep.mubr.f32.mxu0 0.0
    %1987 = vmatmul.mubr.f32.gmra.mrb[0].mxu0 %v1897
    %v1988 = vpop.f32.mrb[0].mxu0
    %v1989 = vadd.f32 0.0, %v1988
    %v1990 = vpop.f32.mrb[0].mxu0
    %1991 = vmatprep.mubr.f32.mxu0 0.0
    %1992 = vmatmul.mubr.f32.gmra.mrb[0].mxu0 %v1900
    %v1993 = vpop.f32.mrb[0].mxu0
    %v1994 = vadd.f32 0.0, %v1993
    %v1995 = vpop.f32.mrb[0].mxu0
    %1996 = vmatprep.mubr.f32.mxu0 0.0
    %1997 = vmatmul.mubr.f32.gmra.mrb[0].mxu0 %v1903
    %v1998 = vpop.f32.mrb[0].mxu0
    %v1999 = vadd.f32 0.0, %v1998
    %v2000 = vpop.f32.mrb[0].mxu0
    %2001 = vmatprep.mubr.f32.mxu0 0.0
    %2002 = vmatmul.mubr.f32.gmra.mrb[0].mxu0 %v1906
    %v2003 = vpop.f32.mrb[0].mxu0
    %v2004 = vadd.f32 0.0, %v2003
    %v2005 = vpop.f32.mrb[0].mxu0
    %2006 = vmatprep.mubr.f32.mxu0 0.0
    %2007 = vmatmul.mubr.f32.gmra.mrb[0].mxu0 %v1909
    %v2008 = vpop.f32.mrb[0].mxu0
    %v2009 = vadd.f32 0.0, %v2008
    %v2010 = vpop.f32.mrb[0].mxu0
    %2011 = vmatprep.mubr.f32.mxu0 0.0
    %2012 = vmatmul.mubr.f32.gmra.mrb[0].mxu0 %v1912
    %v2013 = vpop.f32.mrb[0].mxu0
    %v2014 = vadd.f32 0.0, %v2013
    %v2015 = vpop.f32.mrb[0].mxu0
    %2016 = vdwg.mxu0
    %s2017 = scalar_lea.vmem %s6, 56
    %v2018 = vld [vmem:[%s2017] sm:$0xff]
    %v2019 = vld [vmem:[%s2017 + $0x8] sm:$0xff]
    %v2020 = vld [vmem:[%s2017 + $0x10] sm:$0xff]
    %v2021 = vld [vmem:[%s2017 + $0x18] sm:$0xff]
    %v2022 = vld [vmem:[%s2017 + $0x20] sm:$0xff]
    %v2023 = vld [vmem:[%s2017 + $0x28] sm:$0xff]
    %v2024 = vld [vmem:[%s2017 + $0x30] sm:$0xff]
    %v2026 = vsel %vm1892, %v2018, 0
    %v2029 = vsel %vm1892, %v2019, 0
    %v2032 = vsel %vm1892, %v2020, 0
    %v2035 = vsel %vm1892, %v2021, 0
    %v2038 = vsel %vm1892, %v2022, 0
    %v2041 = vsel %vm1892, %v2023, 0
    %v2044 = vsel %vm1892, %v2024, 0
    %2046 = vmatprep.subr.mxu0 0.0
    %2047 = vmatpush1.msra.mxu0 %v1832
    %2048 = vmatprep.subr.mxu0 0.0
    %2049 = vmatpush1.msra.mxu0 %v1833
    %2050 = vmatprep.subr.mxu0 0.0
    %2051 = vmatpush1.msra.mxu0 %v1834
    %2052 = vmatprep.subr.mxu0 0.0
    %2053 = vmatpush1.msra.mxu0 %v1915
    %2054 = vmatprep.subr.mxu0 0.0
    %2055 = vmatpush1.msra.mxu0 0.0
    %2056 = vmatprep.subr.mxu0 0.0
    %2057 = vmatpush1.msra.mxu0 0.0
    %2058 = vmatprep.subr.mxu0 0.0
    %2059 = vmatpush1.msra.mxu0 0.0
    %2060 = vmatprep.subr.mxu0 0.0
    %2061 = vmatpush1.msra.mxu0 0.0
    %2062 = vmatprep.subr.mxu0 0.0
    %2063 = vmatpush1.msra.mxu0 0.0
    %2064 = vmatprep.subr.mxu0 0.0
    %2065 = vmatpush1.msra.mxu0 0.0
    %2066 = vmatprep.subr.mxu0 0.0
    %2067 = vmatpush1.msra.mxu0 0.0
    %2068 = vmatprep.subr.mxu0 0.0
    %2069 = vmatpush1.msra.mxu0 0.0
    %2070 = vmatprep.subr.mxu0 0.0
    %2071 = vmatpush1.msra.mxu0 0.0
    %2072 = vmatprep.subr.mxu0 0.0
    %2073 = vmatpush1.msra.mxu0 0.0
    %2074 = vmatprep.subr.mxu0 0.0
    %2075 = vmatpush1.msra.mxu0 0.0
    %2076 = vmatprep.subr.mxu0 0.0
    %2077 = vmatpush1.msra.mxu0 0.0
    %2078 = vmatprep.subr.mxu0 0.0
    %2079 = vmatpush1.msra.mxu0 0.0
    %2080 = vmatprep.subr.mxu0 0.0
    %2081 = vmatpush1.msra.mxu0 0.0
    %2082 = vmatprep.subr.mxu0 0.0
    %2083 = vmatpush1.msra.mxu0 0.0
    %2084 = vmatprep.subr.mxu0 0.0
    %2085 = vmatpush1.msra.mxu0 0.0
    %2086 = vmatprep.subr.mxu0 0.0
    %2087 = vmatpush1.msra.mxu0 0.0
    %2088 = vmatprep.subr.mxu0 0.0
    %2089 = vmatpush1.msra.mxu0 0.0
    %2090 = vmatprep.subr.mxu0 0.0
    %2091 = vmatpush1.msra.mxu0 0.0
    %2092 = vmatprep.subr.mxu0 0.0
    %2093 = vmatpush1.msra.mxu0 0.0
    %2094 = vmatprep.subr.mxu0 0.0
    %2095 = vmatpush1.msra.mxu0 0.0
    %2096 = vmatprep.subr.mxu0 0.0
    %2097 = vmatpush1.msra.mxu0 0.0
    %2098 = vmatprep.subr.mxu0 0.0
    %2099 = vmatpush1.msra.mxu0 0.0
    %2100 = vmatprep.subr.mxu0 0.0
    %2101 = vmatpush1.msra.mxu0 0.0
    %2102 = vmatprep.subr.mxu0 0.0
    %2103 = vmatpush1.msra.mxu0 0.0
    %2104 = vmatprep.subr.mxu0 0.0
    %2105 = vmatpush1.msra.mxu0 0.0
    %2106 = vmatprep.subr.mxu0 0.0
    %2107 = vmatpush1.msra.mxu0 0.0
    %2108 = vmatprep.subr.mxu0 0.0
    %2109 = vmatpush1.msra.mxu0 0.0
    %2110 = vmatprep.mubr.f32.mxu0 0.0
    %2111 = vmatmul.mubr.f32.gmra.mrb[0].mxu0 %v2026
    %v2112 = vpop.f32.mrb[0].mxu0
    %v2113 = vadd.f32 0.0, %v2112
    %v2114 = vpop.f32.mrb[0].mxu0
    %2115 = vmatprep.mubr.f32.mxu0 0.0
    %2116 = vmatmul.mubr.f32.gmra.mrb[0].mxu0 %v2029
    %v2117 = vpop.f32.mrb[0].mxu0
    %v2118 = vadd.f32 0.0, %v2117
    %v2119 = vpop.f32.mrb[0].mxu0
    %2120 = vmatprep.mubr.f32.mxu0 0.0
    %2121 = vmatmul.mubr.f32.gmra.mrb[0].mxu0 %v2032
    %v2122 = vpop.f32.mrb[0].mxu0
    %v2123 = vadd.f32 0.0, %v2122
    %v2124 = vpop.f32.mrb[0].mxu0
    %2125 = vmatprep.mubr.f32.mxu0 0.0
    %2126 = vmatmul.mubr.f32.gmra.mrb[0].mxu0 %v2035
    %v2127 = vpop.f32.mrb[0].mxu0
    %v2128 = vadd.f32 0.0, %v2127
    %v2129 = vpop.f32.mrb[0].mxu0
    %2130 = vmatprep.mubr.f32.mxu0 0.0
    %2131 = vmatmul.mubr.f32.gmra.mrb[0].mxu0 %v2038
    %v2132 = vpop.f32.mrb[0].mxu0
    %v2133 = vadd.f32 0.0, %v2132
    %v2134 = vpop.f32.mrb[0].mxu0
    %2135 = vmatprep.mubr.f32.mxu0 0.0
    %2136 = vmatmul.mubr.f32.gmra.mrb[0].mxu0 %v2041
    %v2137 = vpop.f32.mrb[0].mxu0
    %v2138 = vadd.f32 0.0, %v2137
    %v2139 = vpop.f32.mrb[0].mxu0
    %2140 = vmatprep.mubr.f32.mxu0 0.0
    %2141 = vmatmul.mubr.f32.gmra.mrb[0].mxu0 %v2044
    %v2142 = vpop.f32.mrb[0].mxu0
    %v2143 = vadd.f32 0.0, %v2142
    %v2144 = vpop.f32.mrb[0].mxu0
    %2145 = vdwg.mxu0
    %s2146 = scalar_lea.vmem %s6, 112
    %v2147 = vld [vmem:[%s2146] sm:$0xff]
    %v2148 = vld [vmem:[%s2146 + $0x8] sm:$0xff]
    %v2149 = vld [vmem:[%s2146 + $0x10] sm:$0xff]
    %v2150 = vld [vmem:[%s2146 + $0x18] sm:$0xff]
    %v2151 = vld [vmem:[%s2146 + $0x20] sm:$0xff]
    %v2152 = vld [vmem:[%s2146 + $0x28] sm:$0xff]
    %v2153 = vld [vmem:[%s2146 + $0x30] sm:$0xff]
    %v2155 = vsel %vm1892, %v2147, 0
    %v2158 = vsel %vm1892, %v2148, 0
    %v2161 = vsel %vm1892, %v2149, 0
    %v2164 = vsel %vm1892, %v2150, 0
    %v2167 = vsel %vm1892, %v2151, 0
    %v2170 = vsel %vm1892, %v2152, 0
    %v2173 = vsel %vm1892, %v2153, 0
    %2175 = vmatprep.subr.mxu0 0.0
    %2176 = vmatpush1.msra.mxu0 %v1832
    %2177 = vmatprep.subr.mxu0 0.0
    %2178 = vmatpush1.msra.mxu0 %v1833
    %2179 = vmatprep.subr.mxu0 0.0
    %2180 = vmatpush1.msra.mxu0 %v1834
    %2181 = vmatprep.subr.mxu0 0.0
    %2182 = vmatpush1.msra.mxu0 %v1915
    %2183 = vmatprep.subr.mxu0 0.0
    %2184 = vmatpush1.msra.mxu0 0.0
    %2185 = vmatprep.subr.mxu0 0.0
    %2186 = vmatpush1.msra.mxu0 0.0
    %2187 = vmatprep.subr.mxu0 0.0
    %2188 = vmatpush1.msra.mxu0 0.0
    %2189 = vmatprep.subr.mxu0 0.0
    %2190 = vmatpush1.msra.mxu0 0.0
    %2191 = vmatprep.subr.mxu0 0.0
    %2192 = vmatpush1.msra.mxu0 0.0
    %2193 = vmatprep.subr.mxu0 0.0
    %2194 = vmatpush1.msra.mxu0 0.0
    %2195 = vmatprep.subr.mxu0 0.0
    %2196 = vmatpush1.msra.mxu0 0.0
    %2197 = vmatprep.subr.mxu0 0.0
    %2198 = vmatpush1.msra.mxu0 0.0
    %2199 = vmatprep.subr.mxu0 0.0
    %2200 = vmatpush1.msra.mxu0 0.0
    %2201 = vmatprep.subr.mxu0 0.0
    %2202 = vmatpush1.msra.mxu0 0.0
    %2203 = vmatprep.subr.mxu0 0.0
    %2204 = vmatpush1.msra.mxu0 0.0
    %2205 = vmatprep.subr.mxu0 0.0
    %2206 = vmatpush1.msra.mxu0 0.0
    %2207 = vmatprep.subr.mxu0 0.0
    %2208 = vmatpush1.msra.mxu0 0.0
    %2209 = vmatprep.subr.mxu0 0.0
    %2210 = vmatpush1.msra.mxu0 0.0
    %2211 = vmatprep.subr.mxu0 0.0
    %2212 = vmatpush1.msra.mxu0 0.0
    %2213 = vmatprep.subr.mxu0 0.0
    %2214 = vmatpush1.msra.mxu0 0.0
    %2215 = vmatprep.subr.mxu0 0.0
    %2216 = vmatpush1.msra.mxu0 0.0
    %2217 = vmatprep.subr.mxu0 0.0
    %2218 = vmatpush1.msra.mxu0 0.0
    %2219 = vmatprep.subr.mxu0 0.0
    %2220 = vmatpush1.msra.mxu0 0.0
    %2221 = vmatprep.subr.mxu0 0.0
    %2222 = vmatpush1.msra.mxu0 0.0
    %2223 = vmatprep.subr.mxu0 0.0
    %2224 = vmatpush1.msra.mxu0 0.0
    %2225 = vmatprep.subr.mxu0 0.0
    %2226 = vmatpush1.msra.mxu0 0.0
    %2227 = vmatprep.subr.mxu0 0.0
    %2228 = vmatpush1.msra.mxu0 0.0
    %2229 = vmatprep.subr.mxu0 0.0
    %2230 = vmatpush1.msra.mxu0 0.0
    %2231 = vmatprep.subr.mxu0 0.0
    %2232 = vmatpush1.msra.mxu0 0.0
    %2233 = vmatprep.subr.mxu0 0.0
    %2234 = vmatpush1.msra.mxu0 0.0
    %2235 = vmatprep.subr.mxu0 0.0
    %2236 = vmatpush1.msra.mxu0 0.0
    %2237 = vmatprep.subr.mxu0 0.0
    %2238 = vmatpush1.msra.mxu0 0.0
    %2239 = vmatprep.mubr.f32.mxu0 0.0
    %2240 = vmatmul.mubr.f32.gmra.mrb[0].mxu0 %v2155
    %v2241 = vpop.f32.mrb[0].mxu0
    %v2242 = vadd.f32 0.0, %v2241
    %v2243 = vpop.f32.mrb[0].mxu0
    %2244 = vmatprep.mubr.f32.mxu0 0.0
    %2245 = vmatmul.mubr.f32.gmra.mrb[0].mxu0 %v2158
    %v2246 = vpop.f32.mrb[0].mxu0
    %v2247 = vadd.f32 0.0, %v2246
    %v2248 = vpop.f32.mrb[0].mxu0
    %2249 = vmatprep.mubr.f32.mxu0 0.0
    %2250 = vmatmul.mubr.f32.gmra.mrb[0].mxu0 %v2161
    %v2251 = vpop.f32.mrb[0].mxu0
    %v2252 = vadd.f32 0.0, %v2251
    %v2253 = vpop.f32.mrb[0].mxu0
    %2254 = vmatprep.mubr.f32.mxu0 0.0
    %2255 = vmatmul.mubr.f32.gmra.mrb[0].mxu0 %v2164
    %v2256 = vpop.f32.mrb[0].mxu0
    %v2257 = vadd.f32 0.0, %v2256
    %v2258 = vpop.f32.mrb[0].mxu0
    %2259 = vmatprep.mubr.f32.mxu0 0.0
    %2260 = vmatmul.mubr.f32.gmra.mrb[0].mxu0 %v2167
    %v2261 = vpop.f32.mrb[0].mxu0
    %v2262 = vadd.f32 0.0, %v2261
    %v2263 = vpop.f32.mrb[0].mxu0
    %2264 = vmatprep.mubr.f32.mxu0 0.0
    %2265 = vmatmul.mubr.f32.gmra.mrb[0].mxu0 %v2170
    %v2266 = vpop.f32.mrb[0].mxu0
    %v2267 = vadd.f32 0.0, %v2266
    %v2268 = vpop.f32.mrb[0].mxu0
    %2269 = vmatprep.mubr.f32.mxu0 0.0
    %2270 = vmatmul.mubr.f32.gmra.mrb[0].mxu0 %v2173
    %v2271 = vpop.f32.mrb[0].mxu0
    %v2272 = vadd.f32 0.0, %v2271
    %v2273 = vpop.f32.mrb[0].mxu0
    %2274 = vdwg.mxu0
    %v2275 = vlaneseq
    %v2276 = vshrl.u32 %v2275, 7
    %v2277 = vsub.s32 5, %v2276
    %v2278 = vrot.slane %v53, %v2277
    %2279 = vmatprep.subr.mxu0 0.0
    %2280 = vmatpush1.msra.mxu0 %v1837
    %2281 = vmatprep.subr.mxu0 0.0
    %2282 = vmatpush1.msra.mxu0 %v1838
    %2283 = vmatprep.subr.mxu0 0.0
    %2284 = vmatpush1.msra.mxu0 %v1839
    %2285 = vmatprep.subr.mxu0 0.0
    %2286 = vmatpush1.msra.mxu0 %v1840
    %2287 = vmatprep.subr.mxu0 0.0
    %2288 = vmatpush1.msra.mxu0 %v1841
    %2289 = vmatprep.subr.mxu0 0.0
    %2290 = vmatpush1.msra.mxu0 %v1842
    %2291 = vmatprep.subr.mxu0 0.0
    %2292 = vmatpush1.msra.mxu0 %v1843
    %2293 = vmatprep.subr.mxu0 0.0
    %2294 = vmatpush1.msra.mxu0 %v1844
    %2295 = vmatprep.subr.mxu0 0.0
    %2296 = vmatpush1.msra.mxu0 %v1845
    %2297 = vmatprep.subr.mxu0 0.0
    %2298 = vmatpush1.msra.mxu0 %v1846
    %2299 = vmatprep.subr.mxu0 0.0
    %2300 = vmatpush1.msra.mxu0 %v1847
    %2301 = vmatprep.subr.mxu0 0.0
    %2302 = vmatpush1.msra.mxu0 %v1848
    %2303 = vmatprep.subr.mxu0 0.0
    %2304 = vmatpush1.msra.mxu0 %v1849
    %2305 = vmatprep.subr.mxu0 0.0
    %2306 = vmatpush1.msra.mxu0 %v1850
    %2307 = vmatprep.subr.mxu0 0.0
    %2308 = vmatpush1.msra.mxu0 %v1851
    %2309 = vmatprep.subr.mxu0 0.0
    %2310 = vmatpush1.msra.mxu0 %v1852
    %2311 = vmatprep.subr.mxu0 0.0
    %2312 = vmatpush1.msra.mxu0 %v1853
    %2313 = vmatprep.subr.mxu0 0.0
    %2314 = vmatpush1.msra.mxu0 %v1854
    %2315 = vmatprep.subr.mxu0 0.0
    %2316 = vmatpush1.msra.mxu0 %v1855
    %2317 = vmatprep.subr.mxu0 0.0
    %2318 = vmatpush1.msra.mxu0 %v1856
    %2319 = vmatprep.subr.mxu0 0.0
    %2320 = vmatpush1.msra.mxu0 %v1857
    %2321 = vmatprep.subr.mxu0 0.0
    %2322 = vmatpush1.msra.mxu0 %v1858
    %2323 = vmatprep.subr.mxu0 0.0
    %2324 = vmatpush1.msra.mxu0 %v1859
    %2325 = vmatprep.subr.mxu0 0.0
    %2326 = vmatpush1.msra.mxu0 %v1860
    %2327 = vmatprep.subr.mxu0 0.0
    %2328 = vmatpush1.msra.mxu0 %v1861
    %2329 = vmatprep.subr.mxu0 0.0
    %2330 = vmatpush1.msra.mxu0 %v1862
    %2331 = vmatprep.subr.mxu0 0.0
    %2332 = vmatpush1.msra.mxu0 %v1863
    %2333 = vmatprep.subr.mxu0 0.0
    %2334 = vmatpush1.msra.mxu0 %v1864
    %2335 = vmatprep.subr.mxu0 0.0
    %2336 = vmatpush1.msra.mxu0 %v1865
    %2337 = vmatprep.subr.mxu0 0.0
    %2338 = vmatpush1.msra.mxu0 %v1866
    %2339 = vmatprep.subr.mxu0 0.0
    %2340 = vmatpush1.msra.mxu0 %v1867
    %2341 = vmatprep.subr.mxu0 0.0
    %2342 = vmatpush1.msra.mxu0 %v1868
    %2343 = vmatprep.mubr.f32.mxu0 %v2113
    %2344 = vmatmul.mubr.f32.gmra.mrb[0].mxu0 %v1984
    %v2345 = vpop.f32.mrb[0].mxu0
    %v2346 = vadd.f32 %v2278, %v2345
    %v2347 = vpop.f32.mrb[0].mxu0
    %2348 = vmatprep.mubr.f32.mxu0 %v2118
    %2349 = vmatmul.mubr.f32.gmra.mrb[0].mxu0 %v1989
    %v2350 = vpop.f32.mrb[0].mxu0
    %v2351 = vadd.f32 %v2278, %v2350
    %v2352 = vpop.f32.mrb[0].mxu0
    %2353 = vmatprep.mubr.f32.mxu0 %v2123
    %2354 = vmatmul.mubr.f32.gmra.mrb[0].mxu0 %v1994
    %v2355 = vpop.f32.mrb[0].mxu0
    %v2356 = vadd.f32 %v2278, %v2355
    %v2357 = vpop.f32.mrb[0].mxu0
    %2358 = vmatprep.mubr.f32.mxu0 %v2128
    %2359 = vmatmul.mubr.f32.gmra.mrb[0].mxu0 %v1999
    %v2360 = vpop.f32.mrb[0].mxu0
    %v2361 = vadd.f32 %v2278, %v2360
    %v2362 = vpop.f32.mrb[0].mxu0
    %2363 = vmatprep.mubr.f32.mxu0 %v2133
    %2364 = vmatmul.mubr.f32.gmra.mrb[0].mxu0 %v2004
    %v2365 = vpop.f32.mrb[0].mxu0
    %v2366 = vadd.f32 %v2278, %v2365
    %v2367 = vpop.f32.mrb[0].mxu0
    %2368 = vmatprep.mubr.f32.mxu0 %v2138
    %2369 = vmatmul.mubr.f32.gmra.mrb[0].mxu0 %v2009
    %v2370 = vpop.f32.mrb[0].mxu0
    %v2371 = vadd.f32 %v2278, %v2370
    %v2372 = vpop.f32.mrb[0].mxu0
    %2373 = vmatprep.mubr.f32.mxu0 %v2143
    %2374 = vmatmul.mubr.f32.gmra.mrb[0].mxu0 %v2014
    %v2375 = vpop.f32.mrb[0].mxu0
    %v2376 = vadd.f32 %v2278, %v2375
    %v2377 = vpop.f32.mrb[0].mxu0
    %2378 = vdwg.mxu0
    %2379 = vmatprep.subr.mxu0 0.0
    %2380 = vmatpush1.msra.mxu0 %v1869
    %2381 = vmatprep.subr.mxu0 0.0
    %2382 = vmatpush1.msra.mxu0 %v1870
    %2383 = vmatprep.subr.mxu0 0.0
    %2384 = vmatpush1.msra.mxu0 %v1871
    %2385 = vmatprep.subr.mxu0 0.0
    %2386 = vmatpush1.msra.mxu0 %v1872
    %2387 = vmatprep.subr.mxu0 0.0
    %2388 = vmatpush1.msra.mxu0 %v1873
    %2389 = vmatprep.subr.mxu0 0.0
    %2390 = vmatpush1.msra.mxu0 %v1874
    %2391 = vmatprep.subr.mxu0 0.0
    %2392 = vmatpush1.msra.mxu0 %v1875
    %2393 = vmatprep.subr.mxu0 0.0
    %2394 = vmatpush1.msra.mxu0 %v1876
    %2395 = vmatprep.subr.mxu0 0.0
    %2396 = vmatpush1.msra.mxu0 %v1877
    %2397 = vmatprep.subr.mxu0 0.0
    %2398 = vmatpush1.msra.mxu0 %v1878
    %2399 = vmatprep.subr.mxu0 0.0
    %2400 = vmatpush1.msra.mxu0 %v1879
    %2401 = vmatprep.subr.mxu0 0.0
    %2402 = vmatpush1.msra.mxu0 %v1880
    %2403 = vmatprep.subr.mxu0 0.0
    %2404 = vmatpush1.msra.mxu0 %v1881
    %2405 = vmatprep.subr.mxu0 0.0
    %2406 = vmatpush1.msra.mxu0 %v1882
    %2407 = vmatprep.subr.mxu0 0.0
    %2408 = vmatpush1.msra.mxu0 %v1883
    %2409 = vmatprep.subr.mxu0 0.0
    %2410 = vmatpush1.msra.mxu0 %v1884
    %2411 = vmatprep.subr.mxu0 0.0
    %2412 = vmatpush1.msra.mxu0 0.0
    %2413 = vmatprep.subr.mxu0 0.0
    %2414 = vmatpush1.msra.mxu0 0.0
    %2415 = vmatprep.subr.mxu0 0.0
    %2416 = vmatpush1.msra.mxu0 0.0
    %2417 = vmatprep.subr.mxu0 0.0
    %2418 = vmatpush1.msra.mxu0 0.0
    %2419 = vmatprep.subr.mxu0 0.0
    %2420 = vmatpush1.msra.mxu0 0.0
    %2421 = vmatprep.subr.mxu0 0.0
    %2422 = vmatpush1.msra.mxu0 0.0
    %2423 = vmatprep.subr.mxu0 0.0
    %2424 = vmatpush1.msra.mxu0 0.0
    %2425 = vmatprep.subr.mxu0 0.0
    %2426 = vmatpush1.msra.mxu0 0.0
    %2427 = vmatprep.subr.mxu0 0.0
    %2428 = vmatpush1.msra.mxu0 0.0
    %2429 = vmatprep.subr.mxu0 0.0
    %2430 = vmatpush1.msra.mxu0 0.0
    %2431 = vmatprep.subr.mxu0 0.0
    %2432 = vmatpush1.msra.mxu0 0.0
    %2433 = vmatprep.subr.mxu0 0.0
    %2434 = vmatpush1.msra.mxu0 0.0
    %2435 = vmatprep.subr.mxu0 0.0
    %2436 = vmatpush1.msra.mxu0 0.0
    %2437 = vmatprep.subr.mxu0 0.0
    %2438 = vmatpush1.msra.mxu0 0.0
    %2439 = vmatprep.subr.mxu0 0.0
    %2440 = vmatpush1.msra.mxu0 0.0
    %2441 = vmatprep.subr.mxu0 0.0
    %2442 = vmatpush1.msra.mxu0 0.0
    %2443 = vmatprep.mubr.f32.mxu0 0.0
    %2444 = vmatmul.mubr.f32.gmra.mrb[0].mxu0 %v2242
    %v2445 = vpop.f32.mrb[0].mxu0
    %v2446 = vadd.f32 %v2346, %v2445
    %v2447 = vpop.f32.mrb[0].mxu0
    %2448 = vmatprep.mubr.f32.mxu0 0.0
    %2449 = vmatmul.mubr.f32.gmra.mrb[0].mxu0 %v2247
    %v2450 = vpop.f32.mrb[0].mxu0
    %v2451 = vadd.f32 %v2351, %v2450
    %v2452 = vpop.f32.mrb[0].mxu0
    %2453 = vmatprep.mubr.f32.mxu0 0.0
    %2454 = vmatmul.mubr.f32.gmra.mrb[0].mxu0 %v2252
    %v2455 = vpop.f32.mrb[0].mxu0
    %v2456 = vadd.f32 %v2356, %v2455
    %v2457 = vpop.f32.mrb[0].mxu0
    %2458 = vmatprep.mubr.f32.mxu0 0.0
    %2459 = vmatmul.mubr.f32.gmra.mrb[0].mxu0 %v2257
    %v2460 = vpop.f32.mrb[0].mxu0
    %v2461 = vadd.f32 %v2361, %v2460
    %v2462 = vpop.f32.mrb[0].mxu0
    %2463 = vmatprep.mubr.f32.mxu0 0.0
    %2464 = vmatmul.mubr.f32.gmra.mrb[0].mxu0 %v2262
    %v2465 = vpop.f32.mrb[0].mxu0
    %v2466 = vadd.f32 %v2366, %v2465
    %v2467 = vpop.f32.mrb[0].mxu0
    %2468 = vmatprep.mubr.f32.mxu0 0.0
    %2469 = vmatmul.mubr.f32.gmra.mrb[0].mxu0 %v2267
    %v2470 = vpop.f32.mrb[0].mxu0
    %v2471 = vadd.f32 %v2371, %v2470
    %v2472 = vpop.f32.mrb[0].mxu0
    %2473 = vmatprep.mubr.f32.mxu0 0.0
    %2474 = vmatmul.mubr.f32.gmra.mrb[0].mxu0 %v2272
    %v2475 = vpop.f32.mrb[0].mxu0
    %v2476 = vadd.f32 %v2376, %v2475
    %v2477 = vpop.f32.mrb[0].mxu0
    %2478 = vdwg.mxu0
    %v2479 = vmul.f32 %v2446, 0.5
    %v2480 = vmul.f32 %v2451, 0.5
    %v2481 = vmul.f32 %v2456, 0.5
    %v2482 = vmul.f32 %v2461, 0.5
    %v2483 = vmul.f32 %v2466, 0.5
    %v2484 = vmul.f32 %v2471, 0.5
    %v2485 = vmul.f32 %v2476, 0.5
    %v2486 = vtanh.pop %v2479
    %v2487 = vtanh.pop %v2480
    %v2488 = vtanh.pop %v2481
    %v2489 = vtanh.pop %v2482
    %v2490 = vtanh.pop %v2483
    %v2491 = vtanh.pop %v2484
    %v2492 = vtanh.pop %v2485
    %v2493 = vadd.f32 %v2486, 1.0
    %v2494 = vadd.f32 %v2487, 1.0
    %v2495 = vadd.f32 %v2488, 1.0
    %v2496 = vadd.f32 %v2489, 1.0
    %v2497 = vadd.f32 %v2490, 1.0
    %v2498 = vadd.f32 %v2491, 1.0
    %v2499 = vadd.f32 %v2492, 1.0
    %v2500 = vmul.f32 %v2493, 0.5
    %v2501 = vmul.f32 %v2494, 0.5
    %v2502 = vmul.f32 %v2495, 0.5
    %v2503 = vmul.f32 %v2496, 0.5
    %v2504 = vmul.f32 %v2497, 0.5
    %v2505 = vmul.f32 %v2498, 0.5
    %v2506 = vmul.f32 %v2499, 0.5
    %2507 = vst [vmem:[#allocation5] sm:$0xff] %v2500
    %2508 = vst [vmem:[#allocation5 + $0x8] sm:$0xff] %v2501
    %2509 = vst [vmem:[#allocation5 + $0x10] sm:$0xff] %v2502
    %2510 = vst [vmem:[#allocation5 + $0x18] sm:$0xff] %v2503
    %2511 = vst [vmem:[#allocation5 + $0x20] sm:$0xff] %v2504
    %2512 = vst [vmem:[#allocation5 + $0x28] sm:$0xff] %v2505
    %2513 = vst [vmem:[#allocation5 + $0x30] sm:$0xff] %v2506
    // Predicated region
    $region50: #{decoder_forward.1} parent=1 // pred_check
      _
    $region51: #{decoder_forward.1} parent=1 // pred_check_branch
      %2515 = sbr.rel (0) target = $region53
    $region52: #{decoder_forward.1} parent=1 // pred_region
      %s2517 = ssub.s32 896, 896
      %2518 = vsyncadd [#allocation4], %s2517
      %s2519 = sshll.u32 [#allocation5], 4
      %s2520 = int_to_ptr.vmem [resolvable:$true] %s2519
      %2525 = dma.vmem_to_hbm [thread:$0]  %s2520, 896, %s11, [#allocation4], 128, 128, 8
    $region53: #{decoder_forward.1} parent=1 // pred_fallthru
      _
    // Predicated region
    $region54: #{decoder_forward.1} parent=1 // pred_check
      _
    $region55: #{decoder_forward.1} parent=1 // pred_check_branch
      %2527 = sbr.rel (0) target = $region57
    $region56: #{decoder_forward.1} parent=1 // pred_region
      %2528 = dma.done [#allocation4], 896
    $region57: #{decoder_forward.1} parent=1 // pred_fallthru
      _
    %2529 = vsyncpa [#allocation3], 1
    %2530 = vsyncpa [#allocation4], 1

</llo_original>
